<compile_context>
chip_gen: v6e
topology: v6e:2x2x1
jax: 0.10.0
libtpu: 0.0.40
codegen_flags: <defaults>
</compile_context>

<pallas_src>
import jax
import jax.numpy as jnp
from jax.experimental import pallas as pl
from jax.experimental.pallas import tpu as pltpu

EMBED_DIM = 128
N_BLOCKS = 4
LN_EPS = 1e-6
# Candidate row-tile sizes (all multiples of 128 for lane-dense output tiles).
TILE_M_CANDIDATES = (2048, 1536, 1024, 768, 512, 384, 256, 128)


def _round_up(v, m):
    return (v + m - 1) // m * m


def _select_tile(n):
    """Pick tile_m minimizing padded rows, then preferring >=2 grid steps
    (feeds both v7x TensorCores), then the largest tile (least overhead)."""
    best = None
    for t in TILE_M_CANDIDATES:
        n_pad = _round_up(n, t)
        num_tiles = n_pad // t
        key = (n_pad, 0 if num_tiles >= 2 else 1, -t)
        if best is None or key < best[0]:
            best = (key, t, n_pad, num_tiles)
    return best[1], best[2], best[3]


# ----------------------------------------------------------------------------
# Pallas kernel: 4x MLP blocks -> LayerNorm -> decoder head (per row tile)
# ----------------------------------------------------------------------------
def actor_mask_sac_kernel(
    x_ref,      # (TILE_M, C)  f32 token rows (cast to bf16 inside the kernel)
    w1_ref,     # (4, C, C)    bf16 block fc1 weights (in, out)
    b1_ref,     # (4, 1, C)    f32  block fc1 biases
    w2_ref,     # (4, C, C)    bf16 block fc2 weights
    b2_ref,     # (4, 1, C)    f32  block fc2 biases
    gamma_ref,  # (1, C)       f32  LayerNorm weight
    beta_ref,   # (1, C)       f32  LayerNorm bias
    dw1_ref,    # (C, C)       bf16 decoder Linear 1 weight
    db1_ref,    # (1, C)       f32  decoder Linear 1 bias
    dw2_ref,    # (8, C)       bf16 decoder Linear 2 weight padded (rows 2..7 = 0)
    out_ref,    # (1, 8, TILE_M) f32  row 0 = a_avg, row 1 = a_std_log
):
    h_bf16 = x_ref[...].astype(jnp.bfloat16)               # cast once in VMEM
    h_f32 = None

    # --- encoder: 4 plain MLP blocks (Linear -> GELU -> Linear), no residual.
    # GELU uses the tanh approximation (EUP) instead of the exact-erf VALU
    # polynomial (perf review; slight deviation from torch nn.GELU()).
    for i in range(N_BLOCKS):
        h1 = jnp.dot(h_bf16, w1_ref[i],
                     preferred_element_type=jnp.float32) + b1_ref[i]
        h1 = jax.nn.gelu(h1, approximate=True)
        h_f32 = jnp.dot(h1.astype(jnp.bfloat16), w2_ref[i],
                        preferred_element_type=jnp.float32) + b2_ref[i]
        h_bf16 = h_f32.astype(jnp.bfloat16)

    # --- LayerNorm(eps=1e-6), two-pass variance (no cancellation; the centered
    #     value is needed for normalization anyway, so this is free).
    mean = jnp.mean(h_f32, axis=-1, keepdims=True)
    xc = h_f32 - mean
    var = jnp.mean(xc * xc, axis=-1, keepdims=True)
    hn = xc * jax.lax.rsqrt(var + LN_EPS)
    hn = hn * gamma_ref[...] + beta_ref[...]

    # --- decoder_pred: Linear -> GELU -> Linear(embed_dim, 2, bias=False)
    d = jnp.dot(hn.astype(jnp.bfloat16), dw1_ref[...],
                preferred_element_type=jnp.float32) + db1_ref[...]
    d = jax.nn.gelu(d, approximate=True)

    # final projection, lane-dense: (8, C) x (TILE_M, C) contracting C
    #   -> (8, TILE_M); rows 0/1 carry a_avg / a_std_log, rows 2..7 are zero pad
    # TODO(synk): verify in the lowered MLIR that this dot_general does not
    # materialize an XLU transpose of `d`; if it does, fall back to
    # d @ dw2_t -> (TILE_M, 8) with masked stores (output bytes are tiny).
    pred_t = jax.lax.dot_general(
        dw2_ref[...], d.astype(jnp.bfloat16),
        dimension_numbers=(((1,), (1,)), ((), ())),
        preferred_element_type=jnp.float32)
    out_ref[0] = pred_t


# ----------------------------------------------------------------------------
# Tiny pure-JAX per-token path (same math as the kernel).  Used only for the
# cls-token row: the blocks are per-token MLPs, so the cls output is identical
# for every batch element and is computed once, not B*(num tiles) times.
# ----------------------------------------------------------------------------
def _rows_forward_ref(rows_f32, params):
    h = rows_f32.astype(jnp.bfloat16)
    hf = None
    for i in range(N_BLOCKS):
        h1 = jnp.dot(h, params["w1"][i],
                     preferred_element_type=jnp.float32) + params["b1"][i]
        h1 = jax.nn.gelu(h1, approximate=True)
        hf = jnp.dot(h1.astype(jnp.bfloat16), params["w2"][i],
                     preferred_element_type=jnp.float32) + params["b2"][i]
        h = hf.astype(jnp.bfloat16)
    mean = jnp.mean(hf, axis=-1, keepdims=True)
    xc = hf - mean
    var = jnp.mean(xc * xc, axis=-1, keepdims=True)
    hn = xc * jax.lax.rsqrt(var + LN_EPS) * params["gamma"] + params["beta"]
    d = jnp.dot(hn.astype(jnp.bfloat16), params["dw1"],
                preferred_element_type=jnp.float32) + params["db1"]
    d = jax.nn.gelu(d, approximate=True)
    return jnp.dot(d.astype(jnp.bfloat16), params["dw2"].T,
                   preferred_element_type=jnp.float32)        # (rows, 2)


# ----------------------------------------------------------------------------
# Wrapper: pallas_call over token rows + cls path + cheap rsample/tanh epilogue
# ----------------------------------------------------------------------------
@jax.jit
def actor_mask_sac_forward(x, eps, params):
    B, L, C = x.shape
    assert C == EMBED_DIM

    # Token rows go straight to the kernel (no concat / no bf16 cast in HBM).
    n = B * L
    x_flat = x.reshape(n, C)

    tile_m, n_pad, num_tiles = _select_tile(n)
    if n_pad != n:
        # TODO(synk): the residual padding copy could be removed entirely by
        # relying on Pallas' padded trailing block (padded rows are discarded).
        x_flat = jnp.pad(x_flat, ((0, n_pad - n), (0, 0)))

    # pad the (2, C) head weight to 8 sublanes with zero rows (tiny, bf16)
    dw2_pad = jnp.zeros((8, C), jnp.bfloat16).at[:2].set(params["dw2"])

    const3 = lambda i: (0, 0, 0)
    const2 = lambda i: (0, 0)

    # NOTE: weight/bias specs use constant index_maps, so Pallas fetches them
    # once and keeps them VMEM-resident.  (pipeline_mode=pl.Buffered(1) would
    # halve their double-buffer footprint — skipped as a minor item.)
    grid_spec = pltpu.PrefetchScalarGridSpec(
        num_scalar_prefetch=0,
        grid=(num_tiles,),
        in_specs=[
            pl.BlockSpec((tile_m, C), lambda i: (i, 0)),       # x row tile
            pl.BlockSpec((N_BLOCKS, C, C), const3),            # w1 (resident)
            pl.BlockSpec((N_BLOCKS, 1, C), const3),            # b1
            pl.BlockSpec((N_BLOCKS, C, C), const3),            # w2
            pl.BlockSpec((N_BLOCKS, 1, C), const3),            # b2
            pl.BlockSpec((1, C), const2),                      # gamma
            pl.BlockSpec((1, C), const2),                      # beta
            pl.BlockSpec((C, C), const2),                      # dw1
            pl.BlockSpec((1, C), const2),                      # db1
            pl.BlockSpec((8, C), const2),                      # dw2 (padded)
        ],
        out_specs=pl.BlockSpec((1, 8, tile_m), lambda i: (i, 0, 0)),
    )

    pred = pl.pallas_call(
        actor_mask_sac_kernel,
        out_shape=jax.ShapeDtypeStruct((num_tiles, 8, tile_m), jnp.float32),
        grid_spec=grid_spec,
        compiler_params=pltpu.CompilerParams(
            dimension_semantics=("parallel",),
            vmem_limit_bytes=32 * 1024 * 1024),
    )(
        x_flat,
        params["w1"], params["b1"], params["w2"], params["b2"],
        params["gamma"], params["beta"],
        params["dw1"], params["db1"], dw2_pad,
    )

    # --- cls-token path: one row through the same math, broadcast over batch.
    cls_pred = _rows_forward_ref(params["cls_token"].reshape(1, C), params)
    a_avg_cls = jnp.broadcast_to(cls_pred[0, 0], (B, 1))
    a_lg_cls = jnp.broadcast_to(cls_pred[0, 1], (B, 1))

    # --- gather token predictions (rows 0/1 of each lane-dense tile)
    a_avg_tok = pred[:, 0, :].reshape(-1)[:n].reshape(B, L)
    a_lg_tok = pred[:, 1, :].reshape(-1)[:n].reshape(B, L)

    a_avg = jnp.concatenate([a_avg_cls, a_avg_tok], axis=1)       # (B, L+1)
    a_std_log = jnp.concatenate([a_lg_cls, a_lg_tok], axis=1)     # (B, L+1)

    # --- epilogue (trivially cheap): clamp -> exp -> rsample -> tanh
    a_std = jnp.exp(jnp.clip(a_std_log, -16.0, 2.0))   # torch: clamp(-16, 2)
    logits = a_avg + a_std * eps.astype(jnp.float32)
    return jnp.tanh(logits)                             # (B, L+1), slot 0 = cls


# ----------------------------------------------------------------------------
# Deterministic parameter init (mirrors shapes from __init__ / _init_weights)
# ----------------------------------------------------------------------------
def _orthogonal(key, rows, cols):
    a = jax.random.normal(key, (max(rows, cols), min(rows, cols)), jnp.float32)
    q, r = jnp.linalg.qr(a)
    q = q * jnp.sign(jnp.diagonal(r))
    if rows < cols:
        q = q.T
    return q[:rows, :cols]


def init_params(key, embed_dim=EMBED_DIM):
    keys = jax.random.split(key, 2 * N_BLOCKS + 4)
    bias_val = 1e-6

    # matmul weights stored bf16 (MXU-native, no per-call casts);
    # biases / LN params / cls stay f32
    w1 = jnp.stack([_orthogonal(keys[i], embed_dim, embed_dim)
                    for i in range(N_BLOCKS)]).astype(jnp.bfloat16)       # (4,C,C)
    w2 = jnp.stack([_orthogonal(keys[N_BLOCKS + i], embed_dim, embed_dim)
                    for i in range(N_BLOCKS)]).astype(jnp.bfloat16)       # (4,C,C)
    b1 = jnp.full((N_BLOCKS, 1, embed_dim), bias_val, jnp.float32)
    b2 = jnp.full((N_BLOCKS, 1, embed_dim), bias_val, jnp.float32)

    gamma = jnp.ones((1, embed_dim), jnp.float32)                         # LN weight
    beta = jnp.zeros((1, embed_dim), jnp.float32)                         # LN bias

    dw1 = _orthogonal(keys[2 * N_BLOCKS], embed_dim, embed_dim).astype(
        jnp.bfloat16)                                                     # (C,C)
    db1 = jnp.full((1, embed_dim), bias_val, jnp.float32)
    dw2 = _orthogonal(keys[2 * N_BLOCKS + 1], 2, embed_dim).astype(
        jnp.bfloat16)                                                     # (2,C)

    # cls_token ~ trunc_normal(std=0.02)
    cls_token = 0.02 * jax.random.truncated_normal(
        keys[2 * N_BLOCKS + 2], -2.0, 2.0, (1, 1, embed_dim), jnp.float32)

    return dict(cls_token=cls_token, w1=w1, b1=b1, w2=w2, b2=b2,
                gamma=gamma, beta=beta, dw1=dw1, db1=db1, dw2=dw2)


if __name__ == "__main__":
    key = jax.random.PRNGKey(0)
    k_param, k_x, k_eps = jax.random.split(key, 3)

    B, L, C = 2, 8, EMBED_DIM               # batch, num_stocks, embed_dim
    params = init_params(k_param, C)
    x = jax.random.normal(k_x, (B, L, C), jnp.float32)
    # rsample noise for the (L+1) tokens (cls + stocks) per batch element.
    # TODO(synk): torch's Normal.rsample draws its own noise; here it is an
    # explicit deterministic eps input (same reparameterization).
    eps = jax.random.normal(k_eps, (B, L + 1), jnp.float32)

    weight = actor_mask_sac_forward(x, eps, params)
    jax.block_until_ready(weight)
    assert weight.shape == (B, L + 1)
    assert bool(jnp.all(jnp.isfinite(weight)))
    assert bool(jnp.all(jnp.abs(weight) <= 1.0))
    print("KERNEL_OK")
</pallas_src>

<mosaic_0001>
module attributes {stable_mosaic.version = 11 : i64} {
  func.func @actor_mask_sac_kernel(%arg0: i32, %arg1: memref<128x128xf32, #tpu.memory_space<vmem>>, %arg2: memref<4x128x128xbf16, #tpu.memory_space<vmem>>, %arg3: memref<4x1x128xf32, #tpu.memory_space<vmem>>, %arg4: memref<4x128x128xbf16, #tpu.memory_space<vmem>>, %arg5: memref<4x1x128xf32, #tpu.memory_space<vmem>>, %arg6: memref<1x128xf32, #tpu.memory_space<vmem>>, %arg7: memref<1x128xf32, #tpu.memory_space<vmem>>, %arg8: memref<128x128xbf16, #tpu.memory_space<vmem>>, %arg9: memref<1x128xf32, #tpu.memory_space<vmem>>, %arg10: memref<8x128xbf16, #tpu.memory_space<vmem>>, %arg11: memref<1x8x128xf32, #tpu.memory_space<vmem>>) attributes {dimension_semantics = [#tpu.dimension_semantics<parallel>], iteration_bounds = array<i64: 1>, scalar_prefetch = 0 : i64, scratch_operands = 0 : i64, tpu.core_type = #tpu.core_type<tc>, window_params = [{transform_indices = @transform_0, window_bounds = array<i64: 128, 128>}, {pipeline_mode = #tpu.pipeline_mode<synchronous>, transform_indices = @transform_1, window_bounds = array<i64: 4, 128, 128>}, {pipeline_mode = #tpu.pipeline_mode<synchronous>, transform_indices = @transform_2, window_bounds = array<i64: 4, 1, 128>}, {pipeline_mode = #tpu.pipeline_mode<synchronous>, transform_indices = @transform_3, window_bounds = array<i64: 4, 128, 128>}, {pipeline_mode = #tpu.pipeline_mode<synchronous>, transform_indices = @transform_4, window_bounds = array<i64: 4, 1, 128>}, {pipeline_mode = #tpu.pipeline_mode<synchronous>, transform_indices = @transform_5, window_bounds = array<i64: 1, 128>}, {pipeline_mode = #tpu.pipeline_mode<synchronous>, transform_indices = @transform_6, window_bounds = array<i64: 1, 128>}, {pipeline_mode = #tpu.pipeline_mode<synchronous>, transform_indices = @transform_7, window_bounds = array<i64: 128, 128>}, {pipeline_mode = #tpu.pipeline_mode<synchronous>, transform_indices = @transform_8, window_bounds = array<i64: 1, 128>}, {pipeline_mode = #tpu.pipeline_mode<synchronous>, transform_indices = @transform_9, window_bounds = array<i64: 8, 128>}, {transform_indices = @transform_10, window_bounds = array<i64: 1, 8, 128>}]} {
    %c0 = arith.constant 0 : index
    %c0_0 = arith.constant 0 : index
    %0 = vector.load %arg1[%c0, %c0_0] : memref<128x128xf32, #tpu.memory_space<vmem>>, vector<128x128xf32>
    %1 = arith.truncf %0 : vector<128x128xf32> to vector<128x128xbf16>
    %c0_1 = arith.constant 0 : index
    %c0_2 = arith.constant 0 : index
    %c0_3 = arith.constant 0 : index
    %2 = vector.load %arg2[%c0_1, %c0_2, %c0_3] : memref<4x128x128xbf16, #tpu.memory_space<vmem>>, vector<1x128x128xbf16>
    %3 = vector.shape_cast %2 : vector<1x128x128xbf16> to vector<128x128xbf16>
    %cst = arith.constant dense<0.000000e+00> : vector<128x128xf32>
    %4 = tpu.matmul %1, %3, %cst {dimension_numbers = #tpu.dot_dimension_numbers<[1], [0], [0], [1], [0, 0, 1, 1], [], []>} : vector<128x128xbf16>, vector<128x128xbf16>, vector<128x128xf32> -> vector<128x128xf32>
    %c0_4 = arith.constant 0 : index
    %c0_5 = arith.constant 0 : index
    %c0_6 = arith.constant 0 : index
    %5 = vector.load %arg3[%c0_4, %c0_5, %c0_6] : memref<4x1x128xf32, #tpu.memory_space<vmem>>, vector<1x1x128xf32>
    %6 = vector.shape_cast %5 : vector<1x1x128xf32> to vector<1x128xf32>
    %7 = vector.broadcast %6 : vector<1x128xf32> to vector<128x128xf32>
    %8 = arith.addf %4, %7 : vector<128x128xf32>
    %9 = arith.mulf %8, %8 : vector<128x128xf32>
    %10 = arith.mulf %8, %9 : vector<128x128xf32>
    %cst_7 = arith.constant 4.471500e-02 : f32
    %11 = vector.broadcast %cst_7 : f32 to vector<128x128xf32>
    %12 = arith.mulf %11, %10 : vector<128x128xf32>
    %13 = arith.addf %8, %12 : vector<128x128xf32>
    %cst_8 = arith.constant 0.797884583 : f32
    %14 = vector.broadcast %cst_8 : f32 to vector<128x128xf32>
    %15 = arith.mulf %14, %13 : vector<128x128xf32>
    %16 = math.tanh %15 : vector<128x128xf32>
    %cst_9 = arith.constant 1.000000e+00 : f32
    %17 = vector.broadcast %cst_9 : f32 to vector<128x128xf32>
    %18 = arith.addf %17, %16 : vector<128x128xf32>
    %cst_10 = arith.constant 5.000000e-01 : f32
    %19 = vector.broadcast %cst_10 : f32 to vector<128x128xf32>
    %20 = arith.mulf %19, %18 : vector<128x128xf32>
    %21 = arith.mulf %8, %20 : vector<128x128xf32>
    %22 = arith.truncf %21 : vector<128x128xf32> to vector<128x128xbf16>
    %c0_11 = arith.constant 0 : index
    %c0_12 = arith.constant 0 : index
    %c0_13 = arith.constant 0 : index
    %23 = vector.load %arg4[%c0_11, %c0_12, %c0_13] : memref<4x128x128xbf16, #tpu.memory_space<vmem>>, vector<1x128x128xbf16>
    %24 = vector.shape_cast %23 : vector<1x128x128xbf16> to vector<128x128xbf16>
    %cst_14 = arith.constant dense<0.000000e+00> : vector<128x128xf32>
    %25 = tpu.matmul %22, %24, %cst_14 {dimension_numbers = #tpu.dot_dimension_numbers<[1], [0], [0], [1], [0, 0, 1, 1], [], []>} : vector<128x128xbf16>, vector<128x128xbf16>, vector<128x128xf32> -> vector<128x128xf32>
    %c0_15 = arith.constant 0 : index
    %c0_16 = arith.constant 0 : index
    %c0_17 = arith.constant 0 : index
    %26 = vector.load %arg5[%c0_15, %c0_16, %c0_17] : memref<4x1x128xf32, #tpu.memory_space<vmem>>, vector<1x1x128xf32>
    %27 = vector.shape_cast %26 : vector<1x1x128xf32> to vector<1x128xf32>
    %28 = vector.broadcast %27 : vector<1x128xf32> to vector<128x128xf32>
    %29 = arith.addf %25, %28 : vector<128x128xf32>
    %30 = arith.truncf %29 : vector<128x128xf32> to vector<128x128xbf16>
    %c1 = arith.constant 1 : index
    %c0_18 = arith.constant 0 : index
    %c0_19 = arith.constant 0 : index
    %31 = vector.load %arg2[%c1, %c0_18, %c0_19] : memref<4x128x128xbf16, #tpu.memory_space<vmem>>, vector<1x128x128xbf16>
    %32 = vector.shape_cast %31 : vector<1x128x128xbf16> to vector<128x128xbf16>
    %cst_20 = arith.constant dense<0.000000e+00> : vector<128x128xf32>
    %33 = tpu.matmul %30, %32, %cst_20 {dimension_numbers = #tpu.dot_dimension_numbers<[1], [0], [0], [1], [0, 0, 1, 1], [], []>} : vector<128x128xbf16>, vector<128x128xbf16>, vector<128x128xf32> -> vector<128x128xf32>
    %c1_21 = arith.constant 1 : index
    %c0_22 = arith.constant 0 : index
    %c0_23 = arith.constant 0 : index
    %34 = vector.load %arg3[%c1_21, %c0_22, %c0_23] : memref<4x1x128xf32, #tpu.memory_space<vmem>>, vector<1x1x128xf32>
    %35 = vector.shape_cast %34 : vector<1x1x128xf32> to vector<1x128xf32>
    %36 = vector.broadcast %35 : vector<1x128xf32> to vector<128x128xf32>
    %37 = arith.addf %33, %36 : vector<128x128xf32>
    %38 = arith.mulf %37, %37 : vector<128x128xf32>
    %39 = arith.mulf %37, %38 : vector<128x128xf32>
    %cst_24 = arith.constant 4.471500e-02 : f32
    %40 = vector.broadcast %cst_24 : f32 to vector<128x128xf32>
    %41 = arith.mulf %40, %39 : vector<128x128xf32>
    %42 = arith.addf %37, %41 : vector<128x128xf32>
    %cst_25 = arith.constant 0.797884583 : f32
    %43 = vector.broadcast %cst_25 : f32 to vector<128x128xf32>
    %44 = arith.mulf %43, %42 : vector<128x128xf32>
    %45 = math.tanh %44 : vector<128x128xf32>
    %cst_26 = arith.constant 1.000000e+00 : f32
    %46 = vector.broadcast %cst_26 : f32 to vector<128x128xf32>
    %47 = arith.addf %46, %45 : vector<128x128xf32>
    %cst_27 = arith.constant 5.000000e-01 : f32
    %48 = vector.broadcast %cst_27 : f32 to vector<128x128xf32>
    %49 = arith.mulf %48, %47 : vector<128x128xf32>
    %50 = arith.mulf %37, %49 : vector<128x128xf32>
    %51 = arith.truncf %50 : vector<128x128xf32> to vector<128x128xbf16>
    %c1_28 = arith.constant 1 : index
    %c0_29 = arith.constant 0 : index
    %c0_30 = arith.constant 0 : index
    %52 = vector.load %arg4[%c1_28, %c0_29, %c0_30] : memref<4x128x128xbf16, #tpu.memory_space<vmem>>, vector<1x128x128xbf16>
    %53 = vector.shape_cast %52 : vector<1x128x128xbf16> to vector<128x128xbf16>
    %cst_31 = arith.constant dense<0.000000e+00> : vector<128x128xf32>
    %54 = tpu.matmul %51, %53, %cst_31 {dimension_numbers = #tpu.dot_dimension_numbers<[1], [0], [0], [1], [0, 0, 1, 1], [], []>} : vector<128x128xbf16>, vector<128x128xbf16>, vector<128x128xf32> -> vector<128x128xf32>
    %c1_32 = arith.constant 1 : index
    %c0_33 = arith.constant 0 : index
    %c0_34 = arith.constant 0 : index
    %55 = vector.load %arg5[%c1_32, %c0_33, %c0_34] : memref<4x1x128xf32, #tpu.memory_space<vmem>>, vector<1x1x128xf32>
    %56 = vector.shape_cast %55 : vector<1x1x128xf32> to vector<1x128xf32>
    %57 = vector.broadcast %56 : vector<1x128xf32> to vector<128x128xf32>
    %58 = arith.addf %54, %57 : vector<128x128xf32>
    %59 = arith.truncf %58 : vector<128x128xf32> to vector<128x128xbf16>
    %c2 = arith.constant 2 : index
    %c0_35 = arith.constant 0 : index
    %c0_36 = arith.constant 0 : index
    %60 = vector.load %arg2[%c2, %c0_35, %c0_36] : memref<4x128x128xbf16, #tpu.memory_space<vmem>>, vector<1x128x128xbf16>
    %61 = vector.shape_cast %60 : vector<1x128x128xbf16> to vector<128x128xbf16>
    %cst_37 = arith.constant dense<0.000000e+00> : vector<128x128xf32>
    %62 = tpu.matmul %59, %61, %cst_37 {dimension_numbers = #tpu.dot_dimension_numbers<[1], [0], [0], [1], [0, 0, 1, 1], [], []>} : vector<128x128xbf16>, vector<128x128xbf16>, vector<128x128xf32> -> vector<128x128xf32>
    %c2_38 = arith.constant 2 : index
    %c0_39 = arith.constant 0 : index
    %c0_40 = arith.constant 0 : index
    %63 = vector.load %arg3[%c2_38, %c0_39, %c0_40] : memref<4x1x128xf32, #tpu.memory_space<vmem>>, vector<1x1x128xf32>
    %64 = vector.shape_cast %63 : vector<1x1x128xf32> to vector<1x128xf32>
    %65 = vector.broadcast %64 : vector<1x128xf32> to vector<128x128xf32>
    %66 = arith.addf %62, %65 : vector<128x128xf32>
    %67 = arith.mulf %66, %66 : vector<128x128xf32>
    %68 = arith.mulf %66, %67 : vector<128x128xf32>
    %cst_41 = arith.constant 4.471500e-02 : f32
    %69 = vector.broadcast %cst_41 : f32 to vector<128x128xf32>
    %70 = arith.mulf %69, %68 : vector<128x128xf32>
    %71 = arith.addf %66, %70 : vector<128x128xf32>
    %cst_42 = arith.constant 0.797884583 : f32
    %72 = vector.broadcast %cst_42 : f32 to vector<128x128xf32>
    %73 = arith.mulf %72, %71 : vector<128x128xf32>
    %74 = math.tanh %73 : vector<128x128xf32>
    %cst_43 = arith.constant 1.000000e+00 : f32
    %75 = vector.broadcast %cst_43 : f32 to vector<128x128xf32>
    %76 = arith.addf %75, %74 : vector<128x128xf32>
    %cst_44 = arith.constant 5.000000e-01 : f32
    %77 = vector.broadcast %cst_44 : f32 to vector<128x128xf32>
    %78 = arith.mulf %77, %76 : vector<128x128xf32>
    %79 = arith.mulf %66, %78 : vector<128x128xf32>
    %80 = arith.truncf %79 : vector<128x128xf32> to vector<128x128xbf16>
    %c2_45 = arith.constant 2 : index
    %c0_46 = arith.constant 0 : index
    %c0_47 = arith.constant 0 : index
    %81 = vector.load %arg4[%c2_45, %c0_46, %c0_47] : memref<4x128x128xbf16, #tpu.memory_space<vmem>>, vector<1x128x128xbf16>
    %82 = vector.shape_cast %81 : vector<1x128x128xbf16> to vector<128x128xbf16>
    %cst_48 = arith.constant dense<0.000000e+00> : vector<128x128xf32>
    %83 = tpu.matmul %80, %82, %cst_48 {dimension_numbers = #tpu.dot_dimension_numbers<[1], [0], [0], [1], [0, 0, 1, 1], [], []>} : vector<128x128xbf16>, vector<128x128xbf16>, vector<128x128xf32> -> vector<128x128xf32>
    %c2_49 = arith.constant 2 : index
    %c0_50 = arith.constant 0 : index
    %c0_51 = arith.constant 0 : index
    %84 = vector.load %arg5[%c2_49, %c0_50, %c0_51] : memref<4x1x128xf32, #tpu.memory_space<vmem>>, vector<1x1x128xf32>
    %85 = vector.shape_cast %84 : vector<1x1x128xf32> to vector<1x128xf32>
    %86 = vector.broadcast %85 : vector<1x128xf32> to vector<128x128xf32>
    %87 = arith.addf %83, %86 : vector<128x128xf32>
    %88 = arith.truncf %87 : vector<128x128xf32> to vector<128x128xbf16>
    %c3 = arith.constant 3 : index
    %c0_52 = arith.constant 0 : index
    %c0_53 = arith.constant 0 : index
    %89 = vector.load %arg2[%c3, %c0_52, %c0_53] : memref<4x128x128xbf16, #tpu.memory_space<vmem>>, vector<1x128x128xbf16>
    %90 = vector.shape_cast %89 : vector<1x128x128xbf16> to vector<128x128xbf16>
    %cst_54 = arith.constant dense<0.000000e+00> : vector<128x128xf32>
    %91 = tpu.matmul %88, %90, %cst_54 {dimension_numbers = #tpu.dot_dimension_numbers<[1], [0], [0], [1], [0, 0, 1, 1], [], []>} : vector<128x128xbf16>, vector<128x128xbf16>, vector<128x128xf32> -> vector<128x128xf32>
    %c3_55 = arith.constant 3 : index
    %c0_56 = arith.constant 0 : index
    %c0_57 = arith.constant 0 : index
    %92 = vector.load %arg3[%c3_55, %c0_56, %c0_57] : memref<4x1x128xf32, #tpu.memory_space<vmem>>, vector<1x1x128xf32>
    %93 = vector.shape_cast %92 : vector<1x1x128xf32> to vector<1x128xf32>
    %94 = vector.broadcast %93 : vector<1x128xf32> to vector<128x128xf32>
    %95 = arith.addf %91, %94 : vector<128x128xf32>
    %96 = arith.mulf %95, %95 : vector<128x128xf32>
    %97 = arith.mulf %95, %96 : vector<128x128xf32>
    %cst_58 = arith.constant 4.471500e-02 : f32
    %98 = vector.broadcast %cst_58 : f32 to vector<128x128xf32>
    %99 = arith.mulf %98, %97 : vector<128x128xf32>
    %100 = arith.addf %95, %99 : vector<128x128xf32>
    %cst_59 = arith.constant 0.797884583 : f32
    %101 = vector.broadcast %cst_59 : f32 to vector<128x128xf32>
    %102 = arith.mulf %101, %100 : vector<128x128xf32>
    %103 = math.tanh %102 : vector<128x128xf32>
    %cst_60 = arith.constant 1.000000e+00 : f32
    %104 = vector.broadcast %cst_60 : f32 to vector<128x128xf32>
    %105 = arith.addf %104, %103 : vector<128x128xf32>
    %cst_61 = arith.constant 5.000000e-01 : f32
    %106 = vector.broadcast %cst_61 : f32 to vector<128x128xf32>
    %107 = arith.mulf %106, %105 : vector<128x128xf32>
    %108 = arith.mulf %95, %107 : vector<128x128xf32>
    %109 = arith.truncf %108 : vector<128x128xf32> to vector<128x128xbf16>
    %c3_62 = arith.constant 3 : index
    %c0_63 = arith.constant 0 : index
    %c0_64 = arith.constant 0 : index
    %110 = vector.load %arg4[%c3_62, %c0_63, %c0_64] : memref<4x128x128xbf16, #tpu.memory_space<vmem>>, vector<1x128x128xbf16>
    %111 = vector.shape_cast %110 : vector<1x128x128xbf16> to vector<128x128xbf16>
    %cst_65 = arith.constant dense<0.000000e+00> : vector<128x128xf32>
    %112 = tpu.matmul %109, %111, %cst_65 {dimension_numbers = #tpu.dot_dimension_numbers<[1], [0], [0], [1], [0, 0, 1, 1], [], []>} : vector<128x128xbf16>, vector<128x128xbf16>, vector<128x128xf32> -> vector<128x128xf32>
    %c3_66 = arith.constant 3 : index
    %c0_67 = arith.constant 0 : index
    %c0_68 = arith.constant 0 : index
    %113 = vector.load %arg5[%c3_66, %c0_67, %c0_68] : memref<4x1x128xf32, #tpu.memory_space<vmem>>, vector<1x1x128xf32>
    %114 = vector.shape_cast %113 : vector<1x1x128xf32> to vector<1x128xf32>
    %115 = vector.broadcast %114 : vector<1x128xf32> to vector<128x128xf32>
    %116 = arith.addf %112, %115 : vector<128x128xf32>
    %cst_69 = arith.constant dense<0.000000e+00> : vector<128xf32>
    %117 = vector.multi_reduction <add>, %116, %cst_69 [1] : vector<128x128xf32> to vector<128xf32>
    %118 = vector.shape_cast %117 : vector<128xf32> to vector<128x1xf32>
    %cst_70 = arith.constant 1.280000e+02 : f32
    %119 = vector.broadcast %cst_70 : f32 to vector<128x1xf32>
    %120 = arith.divf %118, %119 : vector<128x1xf32>
    %121 = vector.broadcast %120 : vector<128x1xf32> to vector<128x128xf32>
    %122 = arith.subf %116, %121 : vector<128x128xf32>
    %123 = arith.mulf %122, %122 : vector<128x128xf32>
    %cst_71 = arith.constant dense<0.000000e+00> : vector<128xf32>
    %124 = vector.multi_reduction <add>, %123, %cst_71 [1] : vector<128x128xf32> to vector<128xf32>
    %125 = vector.shape_cast %124 : vector<128xf32> to vector<128x1xf32>
    %cst_72 = arith.constant 1.280000e+02 : f32
    %126 = vector.broadcast %cst_72 : f32 to vector<128x1xf32>
    %127 = arith.divf %125, %126 : vector<128x1xf32>
    %cst_73 = arith.constant 9.99999997E-7 : f32
    %128 = vector.broadcast %cst_73 : f32 to vector<128x1xf32>
    %129 = arith.addf %127, %128 : vector<128x1xf32>
    %130 = math.rsqrt %129 : vector<128x1xf32>
    %131 = vector.broadcast %130 : vector<128x1xf32> to vector<128x128xf32>
    %132 = arith.mulf %122, %131 : vector<128x128xf32>
    %c0_74 = arith.constant 0 : index
    %c0_75 = arith.constant 0 : index
    %133 = vector.load %arg6[%c0_74, %c0_75] : memref<1x128xf32, #tpu.memory_space<vmem>>, vector<1x128xf32>
    %134 = vector.broadcast %133 : vector<1x128xf32> to vector<128x128xf32>
    %135 = arith.mulf %132, %134 : vector<128x128xf32>
    %c0_76 = arith.constant 0 : index
    %c0_77 = arith.constant 0 : index
    %136 = vector.load %arg7[%c0_76, %c0_77] : memref<1x128xf32, #tpu.memory_space<vmem>>, vector<1x128xf32>
    %137 = vector.broadcast %136 : vector<1x128xf32> to vector<128x128xf32>
    %138 = arith.addf %135, %137 : vector<128x128xf32>
    %139 = arith.truncf %138 : vector<128x128xf32> to vector<128x128xbf16>
    %c0_78 = arith.constant 0 : index
    %c0_79 = arith.constant 0 : index
    %140 = vector.load %arg8[%c0_78, %c0_79] : memref<128x128xbf16, #tpu.memory_space<vmem>>, vector<128x128xbf16>
    %cst_80 = arith.constant dense<0.000000e+00> : vector<128x128xf32>
    %141 = tpu.matmul %139, %140, %cst_80 {dimension_numbers = #tpu.dot_dimension_numbers<[1], [0], [0], [1], [0, 0, 1, 1], [], []>} : vector<128x128xbf16>, vector<128x128xbf16>, vector<128x128xf32> -> vector<128x128xf32>
    %c0_81 = arith.constant 0 : index
    %c0_82 = arith.constant 0 : index
    %142 = vector.load %arg9[%c0_81, %c0_82] : memref<1x128xf32, #tpu.memory_space<vmem>>, vector<1x128xf32>
    %143 = vector.broadcast %142 : vector<1x128xf32> to vector<128x128xf32>
    %144 = arith.addf %141, %143 : vector<128x128xf32>
    %145 = arith.mulf %144, %144 : vector<128x128xf32>
    %146 = arith.mulf %144, %145 : vector<128x128xf32>
    %cst_83 = arith.constant 4.471500e-02 : f32
    %147 = vector.broadcast %cst_83 : f32 to vector<128x128xf32>
    %148 = arith.mulf %147, %146 : vector<128x128xf32>
    %149 = arith.addf %144, %148 : vector<128x128xf32>
    %cst_84 = arith.constant 0.797884583 : f32
    %150 = vector.broadcast %cst_84 : f32 to vector<128x128xf32>
    %151 = arith.mulf %150, %149 : vector<128x128xf32>
    %152 = math.tanh %151 : vector<128x128xf32>
    %cst_85 = arith.constant 1.000000e+00 : f32
    %153 = vector.broadcast %cst_85 : f32 to vector<128x128xf32>
    %154 = arith.addf %153, %152 : vector<128x128xf32>
    %cst_86 = arith.constant 5.000000e-01 : f32
    %155 = vector.broadcast %cst_86 : f32 to vector<128x128xf32>
    %156 = arith.mulf %155, %154 : vector<128x128xf32>
    %157 = arith.mulf %144, %156 : vector<128x128xf32>
    %c0_87 = arith.constant 0 : index
    %c0_88 = arith.constant 0 : index
    %158 = vector.load %arg10[%c0_87, %c0_88] : memref<8x128xbf16, #tpu.memory_space<vmem>>, vector<8x128xbf16>
    %159 = arith.truncf %157 : vector<128x128xf32> to vector<128x128xbf16>
    %cst_89 = arith.constant dense<0.000000e+00> : vector<8x128xf32>
    %160 = tpu.matmul %158, %159, %cst_89 {dimension_numbers = #tpu.dot_dimension_numbers<[1], [1], [0], [0], [0, 0, 1, 0], [], []>} : vector<8x128xbf16>, vector<128x128xbf16>, vector<8x128xf32> -> vector<8x128xf32>
    %c0_90 = arith.constant 0 : index
    %c0_91 = arith.constant 0 : index
    %c0_92 = arith.constant 0 : index
    %161 = vector.load %arg11[%c0_90, %c0_91, %c0_92] : memref<1x8x128xf32, #tpu.memory_space<vmem>>, vector<1x8x128xf32>
    %162 = vector.shape_cast %161 : vector<1x8x128xf32> to vector<8x128xf32>
    %163 = vector.shape_cast %160 : vector<8x128xf32> to vector<1x8x128xf32>
    tpu.vector_store %arg11[%c0_90, %c0_91, %c0_92], %163 {strides = array<i32>} : memref<1x8x128xf32, #tpu.memory_space<vmem>>, vector<1x8x128xf32>,
    return
  }
  func.func @transform_0(%arg0: i32) -> (i32, i32) {
    %c0_i32 = arith.constant 0 : i32
    %c0_i32_0 = arith.constant 0 : i32
    return %arg0, %c0_i32 : i32, i32
  }
  func.func @transform_1(%arg0: i32) -> (i32, i32, i32) {
    %c0_i32 = arith.constant 0 : i32
    %c0_i32_0 = arith.constant 0 : i32
    %c0_i32_1 = arith.constant 0 : i32
    %c0_i32_2 = arith.constant 0 : i32
    return %c0_i32, %c0_i32_0, %c0_i32_1 : i32, i32, i32
  }
  func.func @transform_2(%arg0: i32) -> (i32, i32, i32) {
    %c0_i32 = arith.constant 0 : i32
    %c0_i32_0 = arith.constant 0 : i32
    %c0_i32_1 = arith.constant 0 : i32
    %c0_i32_2 = arith.constant 0 : i32
    return %c0_i32, %c0_i32_0, %c0_i32_1 : i32, i32, i32
  }
  func.func @transform_3(%arg0: i32) -> (i32, i32, i32) {
    %c0_i32 = arith.constant 0 : i32
    %c0_i32_0 = arith.constant 0 : i32
    %c0_i32_1 = arith.constant 0 : i32
    %c0_i32_2 = arith.constant 0 : i32
    return %c0_i32, %c0_i32_0, %c0_i32_1 : i32, i32, i32
  }
  func.func @transform_4(%arg0: i32) -> (i32, i32, i32) {
    %c0_i32 = arith.constant 0 : i32
    %c0_i32_0 = arith.constant 0 : i32
    %c0_i32_1 = arith.constant 0 : i32
    %c0_i32_2 = arith.constant 0 : i32
    return %c0_i32, %c0_i32_0, %c0_i32_1 : i32, i32, i32
  }
  func.func @transform_5(%arg0: i32) -> (i32, i32) {
    %c0_i32 = arith.constant 0 : i32
    %c0_i32_0 = arith.constant 0 : i32
    %c0_i32_1 = arith.constant 0 : i32
    return %c0_i32, %c0_i32_0 : i32, i32
  }
  func.func @transform_6(%arg0: i32) -> (i32, i32) {
    %c0_i32 = arith.constant 0 : i32
    %c0_i32_0 = arith.constant 0 : i32
    %c0_i32_1 = arith.constant 0 : i32
    return %c0_i32, %c0_i32_0 : i32, i32
  }
  func.func @transform_7(%arg0: i32) -> (i32, i32) {
    %c0_i32 = arith.constant 0 : i32
    %c0_i32_0 = arith.constant 0 : i32
    %c0_i32_1 = arith.constant 0 : i32
    return %c0_i32, %c0_i32_0 : i32, i32
  }
  func.func @transform_8(%arg0: i32) -> (i32, i32) {
    %c0_i32 = arith.constant 0 : i32
    %c0_i32_0 = arith.constant 0 : i32
    %c0_i32_1 = arith.constant 0 : i32
    return %c0_i32, %c0_i32_0 : i32, i32
  }
  func.func @transform_9(%arg0: i32) -> (i32, i32) {
    %c0_i32 = arith.constant 0 : i32
    %c0_i32_0 = arith.constant 0 : i32
    %c0_i32_1 = arith.constant 0 : i32
    return %c0_i32, %c0_i32_0 : i32, i32
  }
  func.func @transform_10(%arg0: i32) -> (i32, i32, i32) {
    %c0_i32 = arith.constant 0 : i32
    %c0_i32_0 = arith.constant 0 : i32
    %c0_i32_1 = arith.constant 0 : i32
    return %arg0, %c0_i32, %c0_i32_0 : i32, i32, i32
  }
}

</mosaic_0001>

<llo_original>
// kernel: actor_mask_sac_forward.1
$region0: #{actor_mask_sac_forward.1}
  #allocation0 [shape = 'u32[]', space=smem, size = 0x4, offset = 0x4, fixed_abs, tag = 'smem constant byte address 0x4 - core index']
  #allocation1 [shape = 'u32[144,128]{1,0:T(1,128)}', space=vmem, size = 0x12000, scoped, tag = 'internal scratch']
  %s0 = inlined_call_operand.vmem [shape: f32[128,128], index: 0, kind: input, shape index: {}]
  %s1 = inlined_call_operand.hbm [shape: bf16[4,128,128], index: 1, kind: input, shape index: {}]
  %s2 = inlined_call_operand.vmem [shape: f32[4,1,128], index: 2, kind: input, shape index: {}]
  %s3 = inlined_call_operand.hbm [shape: bf16[4,128,128], index: 3, kind: input, shape index: {}]
  %s4 = inlined_call_operand.vmem [shape: f32[4,1,128], index: 4, kind: input, shape index: {}]
  %s5 = inlined_call_operand.vmem [shape: f32[1,128], index: 5, kind: input, shape index: {}]
  %s6 = inlined_call_operand.vmem [shape: f32[1,128], index: 6, kind: input, shape index: {}]
  %s7 = inlined_call_operand.vmem [shape: bf16[128,128], index: 7, kind: input, shape index: {}]
  %s8 = inlined_call_operand.vmem [shape: f32[1,128], index: 8, kind: input, shape index: {}]
  %s9 = inlined_call_operand.vmem [shape: bf16[8,128], index: 9, kind: input, shape index: {}]
  %s10 = inlined_call_operand.vmem [shape: f32[1,8,128], index: 10, kind: output, shape index: {}]
  %s11 = sld [smem:[#allocation0]]
  $region58: #{actor_mask_sac_forward.1} parent=0
    _
  %s13 = ssub.s32 1, %s11
  %s14 = scalar_select 0, %s13, %s11
  $region1: #{actor_mask_sac_forward.1} parent=0
    #allocation2 [shape = 'u8[131072]{0}', space=vmem, size = 0x20000, scoped, tag = 'input window, operand 1, single buffered']
    #allocation3 [shape = 's32[1]{0}', space=sflag, size = 0x4, scoped, tag = 'scoped memory for actor_mask_sac_forward.1']
    #allocation4 [shape = 'u8[131072]{0}', space=vmem, size = 0x20000, scoped, tag = 'input window, operand 3, single buffered']
    #allocation5 [shape = 's32[1]{0}', space=sflag, size = 0x4, scoped, tag = 'scoped memory for actor_mask_sac_forward.1']
    %15 = vsyncpa [#allocation3], 0
    %16 = vsyncpa [#allocation5], 0
    // Predicated region
    $region2: #{actor_mask_sac_forward.1} parent=1 // pred_check
      _
    $region3: #{actor_mask_sac_forward.1} parent=1 // pred_check_branch
      %18 = sbr.rel (0) target = $region5
    $region4: #{actor_mask_sac_forward.1} parent=1 // pred_region
      _
    $region5: #{actor_mask_sac_forward.1} parent=1 // pred_fallthru
      _
    // Predicated region
    $region6: #{actor_mask_sac_forward.1} parent=1 // pred_check
      _
    $region7: #{actor_mask_sac_forward.1} parent=1 // pred_check_branch
      %20 = sbr.rel (0) target = $region9
    $region8: #{actor_mask_sac_forward.1} parent=1 // pred_region
      %s22 = ssub.s32 4096, 4096
      %23 = vsyncadd [#allocation3], %s22
      %s24 = sshll.u32 [#allocation2], 4
      %s25 = int_to_ptr.vmem [resolvable:$true] %s24
      %30 = dma.hbm_to_vmem [thread:$0]  %s1, 4096, %s25, [#allocation3], 64, 64, 4
    $region9: #{actor_mask_sac_forward.1} parent=1 // pred_fallthru
      _
    // Predicated region
    $region10: #{actor_mask_sac_forward.1} parent=1 // pred_check
      _
    $region11: #{actor_mask_sac_forward.1} parent=1 // pred_check_branch
      %32 = sbr.rel (0) target = $region13
    $region12: #{actor_mask_sac_forward.1} parent=1 // pred_region
      _
    $region13: #{actor_mask_sac_forward.1} parent=1 // pred_fallthru
      _
    // Predicated region
    $region14: #{actor_mask_sac_forward.1} parent=1 // pred_check
      _
    $region15: #{actor_mask_sac_forward.1} parent=1 // pred_check_branch
      %34 = sbr.rel (0) target = $region17
    $region16: #{actor_mask_sac_forward.1} parent=1 // pred_region
      %s36 = ssub.s32 4096, 4096
      %37 = vsyncadd [#allocation5], %s36
      %s38 = sshll.u32 [#allocation4], 4
      %s39 = int_to_ptr.vmem [resolvable:$true] %s38
      %44 = dma.hbm_to_vmem [thread:$0]  %s3, 4096, %s39, [#allocation5], 64, 64, 4
    $region17: #{actor_mask_sac_forward.1} parent=1 // pred_fallthru
      _
    // Predicated region
    $region18: #{actor_mask_sac_forward.1} parent=1 // pred_check
      _
    $region19: #{actor_mask_sac_forward.1} parent=1 // pred_check_branch
      %46 = sbr.rel (0) target = $region21
    $region20: #{actor_mask_sac_forward.1} parent=1 // pred_region
      _
    $region21: #{actor_mask_sac_forward.1} parent=1 // pred_fallthru
      _
    // Predicated region
    $region22: #{actor_mask_sac_forward.1} parent=1 // pred_check
      _
    $region23: #{actor_mask_sac_forward.1} parent=1 // pred_check_branch
      %48 = sbr.rel (0) target = $region25
    $region24: #{actor_mask_sac_forward.1} parent=1 // pred_region
      _
    $region25: #{actor_mask_sac_forward.1} parent=1 // pred_fallthru
      _
    // Predicated region
    $region26: #{actor_mask_sac_forward.1} parent=1 // pred_check
      _
    $region27: #{actor_mask_sac_forward.1} parent=1 // pred_check_branch
      %50 = sbr.rel (0) target = $region29
    $region28: #{actor_mask_sac_forward.1} parent=1 // pred_region
      _
    $region29: #{actor_mask_sac_forward.1} parent=1 // pred_fallthru
      _
    // Predicated region
    $region30: #{actor_mask_sac_forward.1} parent=1 // pred_check
      _
    $region31: #{actor_mask_sac_forward.1} parent=1 // pred_check_branch
      %52 = sbr.rel (0) target = $region33
    $region32: #{actor_mask_sac_forward.1} parent=1 // pred_region
      _
    $region33: #{actor_mask_sac_forward.1} parent=1 // pred_fallthru
      _
    // Predicated region
    $region34: #{actor_mask_sac_forward.1} parent=1 // pred_check
      _
    $region35: #{actor_mask_sac_forward.1} parent=1 // pred_check_branch
      %54 = sbr.rel (0) target = $region37
    $region36: #{actor_mask_sac_forward.1} parent=1 // pred_region
      _
    $region37: #{actor_mask_sac_forward.1} parent=1 // pred_fallthru
      _
    // Predicated region
    $region38: #{actor_mask_sac_forward.1} parent=1 // pred_check
      _
    $region39: #{actor_mask_sac_forward.1} parent=1 // pred_check_branch
      %56 = sbr.rel (0) target = $region41
    $region40: #{actor_mask_sac_forward.1} parent=1 // pred_region
      _
    $region41: #{actor_mask_sac_forward.1} parent=1 // pred_fallthru
      _
    // Predicated region
    $region42: #{actor_mask_sac_forward.1} parent=1 // pred_check
      _
    $region43: #{actor_mask_sac_forward.1} parent=1 // pred_check_branch
      %58 = sbr.rel (0) target = $region45
    $region44: #{actor_mask_sac_forward.1} parent=1 // pred_region
      %59 = dma.done [#allocation3], 4096
    $region45: #{actor_mask_sac_forward.1} parent=1 // pred_fallthru
      _
    // Predicated region
    $region46: #{actor_mask_sac_forward.1} parent=1 // pred_check
      _
    $region47: #{actor_mask_sac_forward.1} parent=1 // pred_check_branch
      %61 = sbr.rel (0) target = $region49
    $region48: #{actor_mask_sac_forward.1} parent=1 // pred_region
      %62 = dma.done [#allocation5], 4096
    $region49: #{actor_mask_sac_forward.1} parent=1 // pred_fallthru
      _
    %v64 = vld [vmem:[%s0] sm:$0xff]
    %v65 = vld [vmem:[%s0 + $0x8] sm:$0xff]
    %v66 = vld [vmem:[%s0 + $0x10] sm:$0xff]
    %v67 = vld [vmem:[%s0 + $0x18] sm:$0xff]
    %v68 = vld [vmem:[%s0 + $0x20] sm:$0xff]
    %v69 = vld [vmem:[%s0 + $0x28] sm:$0xff]
    %v70 = vld [vmem:[%s0 + $0x30] sm:$0xff]
    %v71 = vld [vmem:[%s0 + $0x38] sm:$0xff]
    %v72 = vld [vmem:[%s0 + $0x40] sm:$0xff]
    %v73 = vld [vmem:[%s0 + $0x48] sm:$0xff]
    %v74 = vld [vmem:[%s0 + $0x50] sm:$0xff]
    %v75 = vld [vmem:[%s0 + $0x58] sm:$0xff]
    %v76 = vld [vmem:[%s0 + $0x60] sm:$0xff]
    %v77 = vld [vmem:[%s0 + $0x68] sm:$0xff]
    %v78 = vld [vmem:[%s0 + $0x70] sm:$0xff]
    %v79 = vld [vmem:[%s0 + $0x78] sm:$0xff]
    %v80 = vpack.c.bf16 %v65, %v64
    %v81 = vpack.c.bf16 %v67, %v66
    %v82 = vpack.c.bf16 %v69, %v68
    %v83 = vpack.c.bf16 %v71, %v70
    %v84 = vpack.c.bf16 %v73, %v72
    %v85 = vpack.c.bf16 %v75, %v74
    %v86 = vpack.c.bf16 %v77, %v76
    %v87 = vpack.c.bf16 %v79, %v78
    %v88 = vld [vmem:[#allocation2] sm:$0xf]
    %v89 = vld [vmem:[#allocation2 + $0x4] sm:$0xf]
    %v90 = vld [vmem:[#allocation2 + $0x8] sm:$0xf]
    %v91 = vld [vmem:[#allocation2 + $0xc] sm:$0xf]
    %v92 = vld [vmem:[#allocation2 + $0x10] sm:$0xf]
    %v93 = vld [vmem:[#allocation2 + $0x14] sm:$0xf]
    %v94 = vld [vmem:[#allocation2 + $0x18] sm:$0xf]
    %v95 = vld [vmem:[#allocation2 + $0x1c] sm:$0xf]
    %v96 = vld [vmem:[#allocation2 + $0x20] sm:$0xf]
    %v97 = vld [vmem:[#allocation2 + $0x24] sm:$0xf]
    %v98 = vld [vmem:[#allocation2 + $0x28] sm:$0xf]
    %v99 = vld [vmem:[#allocation2 + $0x2c] sm:$0xf]
    %v100 = vld [vmem:[#allocation2 + $0x30] sm:$0xf]
    %v101 = vld [vmem:[#allocation2 + $0x34] sm:$0xf]
    %v102 = vld [vmem:[#allocation2 + $0x38] sm:$0xf]
    %v103 = vld [vmem:[#allocation2 + $0x3c] sm:$0xf]
    %v104 = vld [vmem:[%s2] sm:$0x1]
    %v106 = vlaneseq
    %v107 = vshrl.u32 %v106, 7
    %v108 = vsub.s32 0, %v107
    %v109 = vrot.slane %v104, %v108
    %v127 = vunpack.c.l.b16 %v88
    %v128 = vunpack.c.l.b16 %v89
    %v129 = vunpack.c.l.b16 %v90
    %v130 = vunpack.c.l.b16 %v91
    %v131 = vunpack.c.l.b16 %v92
    %v132 = vunpack.c.l.b16 %v93
    %v133 = vunpack.c.l.b16 %v94
    %v134 = vunpack.c.l.b16 %v95
    %v135 = vunpack.c.l.b16 %v96
    %v136 = vunpack.c.l.b16 %v97
    %v137 = vunpack.c.l.b16 %v98
    %v138 = vunpack.c.l.b16 %v99
    %v139 = vunpack.c.l.b16 %v100
    %v140 = vunpack.c.l.b16 %v101
    %v141 = vunpack.c.l.b16 %v102
    %v142 = vunpack.c.l.b16 %v103
    %v143 = vpack.c.b16 %v128, %v127
    %v144 = vpack.c.b16 %v130, %v129
    %v145 = vpack.c.b16 %v132, %v131
    %v146 = vpack.c.b16 %v134, %v133
    %v147 = vpack.c.b16 %v136, %v135
    %v148 = vpack.c.b16 %v138, %v137
    %v149 = vpack.c.b16 %v140, %v139
    %v150 = vpack.c.b16 %v142, %v141
    %159 = vmatprep.subr.bf16.mxu0 0
    %160 = vmatpush1.bf16.msra.mxu0 %v150
    %161 = vmatprep.subr.bf16.mxu0 0
    %162 = vmatpush1.bf16.msra.mxu0 %v149
    %163 = vmatprep.subr.bf16.mxu0 0
    %164 = vmatpush1.bf16.msra.mxu0 %v148
    %165 = vmatprep.subr.bf16.mxu0 0
    %166 = vmatpush1.bf16.msra.mxu0 %v147
    %167 = vmatprep.subr.bf16.mxu0 0
    %168 = vmatpush1.bf16.msra.mxu0 %v146
    %169 = vmatprep.subr.bf16.mxu0 0
    %170 = vmatpush1.bf16.msra.mxu0 %v145
    %171 = vmatprep.subr.bf16.mxu0 0
    %172 = vmatpush1.bf16.msra.mxu0 %v144
    %173 = vmatprep.subr.bf16.mxu0 0
    %174 = vmatpush1.bf16.msra.mxu0 %v143
    %175 = vmatprep.subr.bf16.mxu0 0
    %176 = vmatpush2.bf16.msra.mxu0 0
    %177 = vmatprep.subr.bf16.mxu0 0
    %178 = vmatpush2.bf16.msra.mxu0 0
    %179 = vmatprep.subr.bf16.mxu0 0
    %180 = vmatpush2.bf16.msra.mxu0 0
    %181 = vmatprep.subr.bf16.mxu0 0
    %182 = vmatpush2.bf16.msra.mxu0 0
    %183 = vmatprep.subr.bf16.mxu0 0
    %184 = vmatpush2.bf16.msra.mxu0 0
    %185 = vmatprep.subr.bf16.mxu0 0
    %186 = vmatpush2.bf16.msra.mxu0 0
    %187 = vmatprep.subr.bf16.mxu0 0
    %188 = vmatpush2.bf16.msra.mxu0 0
    %189 = vmatprep.subr.bf16.mxu0 0
    %190 = vmatpush2.bf16.msra.mxu0 0
    %191 = vmatprep.mubr.bf16.mxu0 0
    %192 = vmatmul.mubr.bf16.gmra.mxu0 %v80
    %v193 = vpop.f32.mrf.mxu0
    %v194 = vadd.f32 %v109, %v193
    %v195 = vpop.f32.mrf.mxu0
    %v196 = vpop.f32.mrf.mxu0
    %v197 = vadd.f32 %v109, %v196
    %v198 = vpop.f32.mrf.mxu0
    %199 = vmatprep.mubr.bf16.mxu0 0
    %200 = vmatmul.mubr.bf16.gmra.mxu0 %v81
    %v201 = vpop.f32.mrf.mxu0
    %v202 = vadd.f32 %v109, %v201
    %v203 = vpop.f32.mrf.mxu0
    %v204 = vpop.f32.mrf.mxu0
    %v205 = vadd.f32 %v109, %v204
    %v206 = vpop.f32.mrf.mxu0
    %207 = vmatprep.mubr.bf16.mxu0 0
    %208 = vmatmul.mubr.bf16.gmra.mxu0 %v82
    %v209 = vpop.f32.mrf.mxu0
    %v210 = vadd.f32 %v109, %v209
    %v211 = vpop.f32.mrf.mxu0
    %v212 = vpop.f32.mrf.mxu0
    %v213 = vadd.f32 %v109, %v212
    %v214 = vpop.f32.mrf.mxu0
    %215 = vmatprep.mubr.bf16.mxu0 0
    %216 = vmatmul.mubr.bf16.gmra.mxu0 %v83
    %v217 = vpop.f32.mrf.mxu0
    %v218 = vadd.f32 %v109, %v217
    %v219 = vpop.f32.mrf.mxu0
    %v220 = vpop.f32.mrf.mxu0
    %v221 = vadd.f32 %v109, %v220
    %v222 = vpop.f32.mrf.mxu0
    %223 = vmatprep.mubr.bf16.mxu0 0
    %224 = vmatmul.mubr.bf16.gmra.mxu0 %v84
    %v225 = vpop.f32.mrf.mxu0
    %v226 = vadd.f32 %v109, %v225
    %v227 = vpop.f32.mrf.mxu0
    %v228 = vpop.f32.mrf.mxu0
    %v229 = vadd.f32 %v109, %v228
    %v230 = vpop.f32.mrf.mxu0
    %231 = vmatprep.mubr.bf16.mxu0 0
    %232 = vmatmul.mubr.bf16.gmra.mxu0 %v85
    %v233 = vpop.f32.mrf.mxu0
    %v234 = vadd.f32 %v109, %v233
    %v235 = vpop.f32.mrf.mxu0
    %v236 = vpop.f32.mrf.mxu0
    %v237 = vadd.f32 %v109, %v236
    %v238 = vpop.f32.mrf.mxu0
    %239 = vmatprep.mubr.bf16.mxu0 0
    %240 = vmatmul.mubr.bf16.gmra.mxu0 %v86
    %v241 = vpop.f32.mrf.mxu0
    %v242 = vadd.f32 %v109, %v241
    %v243 = vpop.f32.mrf.mxu0
    %v244 = vpop.f32.mrf.mxu0
    %v245 = vadd.f32 %v109, %v244
    %v246 = vpop.f32.mrf.mxu0
    %247 = vmatprep.mubr.bf16.mxu0 0
    %248 = vmatmul.mubr.bf16.gmra.mxu0 %v87
    %v249 = vpop.f32.mrf.mxu0
    %v250 = vadd.f32 %v109, %v249
    %v251 = vpop.f32.mrf.mxu0
    %v252 = vpop.f32.mrf.mxu0
    %v253 = vadd.f32 %v109, %v252
    %v254 = vpop.f32.mrf.mxu0
    %255 = vdwg.mxu0
    %v256 = vmul.f32 %v194, %v194
    %v257 = vmul.f32 %v197, %v197
    %v258 = vmul.f32 %v202, %v202
    %v259 = vmul.f32 %v205, %v205
    %v260 = vmul.f32 %v210, %v210
    %v261 = vmul.f32 %v213, %v213
    %v262 = vmul.f32 %v218, %v218
    %v263 = vmul.f32 %v221, %v221
    %v264 = vmul.f32 %v226, %v226
    %v265 = vmul.f32 %v229, %v229
    %v266 = vmul.f32 %v234, %v234
    %v267 = vmul.f32 %v237, %v237
    %v268 = vmul.f32 %v242, %v242
    %v269 = vmul.f32 %v245, %v245
    %v270 = vmul.f32 %v250, %v250
    %v271 = vmul.f32 %v253, %v253
    %v272 = vmul.f32 %v194, %v256
    %v273 = vmul.f32 %v197, %v257
    %v274 = vmul.f32 %v202, %v258
    %v275 = vmul.f32 %v205, %v259
    %v276 = vmul.f32 %v210, %v260
    %v277 = vmul.f32 %v213, %v261
    %v278 = vmul.f32 %v218, %v262
    %v279 = vmul.f32 %v221, %v263
    %v280 = vmul.f32 %v226, %v264
    %v281 = vmul.f32 %v229, %v265
    %v282 = vmul.f32 %v234, %v266
    %v283 = vmul.f32 %v237, %v267
    %v284 = vmul.f32 %v242, %v268
    %v285 = vmul.f32 %v245, %v269
    %v286 = vmul.f32 %v250, %v270
    %v287 = vmul.f32 %v253, %v271
    %v288 = vmul.f32 %v272, 0.044715
    %v289 = vmul.f32 %v273, 0.044715
    %v290 = vmul.f32 %v274, 0.044715
    %v291 = vmul.f32 %v275, 0.044715
    %v292 = vmul.f32 %v276, 0.044715
    %v293 = vmul.f32 %v277, 0.044715
    %v294 = vmul.f32 %v278, 0.044715
    %v295 = vmul.f32 %v279, 0.044715
    %v296 = vmul.f32 %v280, 0.044715
    %v297 = vmul.f32 %v281, 0.044715
    %v298 = vmul.f32 %v282, 0.044715
    %v299 = vmul.f32 %v283, 0.044715
    %v300 = vmul.f32 %v284, 0.044715
    %v301 = vmul.f32 %v285, 0.044715
    %v302 = vmul.f32 %v286, 0.044715
    %v303 = vmul.f32 %v287, 0.044715
    %v304 = vadd.f32 %v194, %v288
    %v305 = vadd.f32 %v197, %v289
    %v306 = vadd.f32 %v202, %v290
    %v307 = vadd.f32 %v205, %v291
    %v308 = vadd.f32 %v210, %v292
    %v309 = vadd.f32 %v213, %v293
    %v310 = vadd.f32 %v218, %v294
    %v311 = vadd.f32 %v221, %v295
    %v312 = vadd.f32 %v226, %v296
    %v313 = vadd.f32 %v229, %v297
    %v314 = vadd.f32 %v234, %v298
    %v315 = vadd.f32 %v237, %v299
    %v316 = vadd.f32 %v242, %v300
    %v317 = vadd.f32 %v245, %v301
    %v318 = vadd.f32 %v250, %v302
    %v319 = vadd.f32 %v253, %v303
    %v320 = vmul.f32 %v304, 0.7978846
    %v321 = vmul.f32 %v305, 0.7978846
    %v322 = vmul.f32 %v306, 0.7978846
    %v323 = vmul.f32 %v307, 0.7978846
    %v324 = vmul.f32 %v308, 0.7978846
    %v325 = vmul.f32 %v309, 0.7978846
    %v326 = vmul.f32 %v310, 0.7978846
    %v327 = vmul.f32 %v311, 0.7978846
    %v328 = vmul.f32 %v312, 0.7978846
    %v329 = vmul.f32 %v313, 0.7978846
    %v330 = vmul.f32 %v314, 0.7978846
    %v331 = vmul.f32 %v315, 0.7978846
    %v332 = vmul.f32 %v316, 0.7978846
    %v333 = vmul.f32 %v317, 0.7978846
    %v334 = vmul.f32 %v318, 0.7978846
    %v335 = vmul.f32 %v319, 0.7978846
    %v336 = vtanh.pop %v320
    %v337 = vtanh.pop %v321
    %v338 = vtanh.pop %v322
    %v339 = vtanh.pop %v323
    %v340 = vtanh.pop %v324
    %v341 = vtanh.pop %v325
    %v342 = vtanh.pop %v326
    %v343 = vtanh.pop %v327
    %v344 = vtanh.pop %v328
    %v345 = vtanh.pop %v329
    %v346 = vtanh.pop %v330
    %v347 = vtanh.pop %v331
    %v348 = vtanh.pop %v332
    %v349 = vtanh.pop %v333
    %v350 = vtanh.pop %v334
    %v351 = vtanh.pop %v335
    %v352 = vadd.f32 %v336, 1.0
    %v353 = vadd.f32 %v337, 1.0
    %v354 = vadd.f32 %v338, 1.0
    %v355 = vadd.f32 %v339, 1.0
    %v356 = vadd.f32 %v340, 1.0
    %v357 = vadd.f32 %v341, 1.0
    %v358 = vadd.f32 %v342, 1.0
    %v359 = vadd.f32 %v343, 1.0
    %v360 = vadd.f32 %v344, 1.0
    %v361 = vadd.f32 %v345, 1.0
    %v362 = vadd.f32 %v346, 1.0
    %v363 = vadd.f32 %v347, 1.0
    %v364 = vadd.f32 %v348, 1.0
    %v365 = vadd.f32 %v349, 1.0
    %v366 = vadd.f32 %v350, 1.0
    %v367 = vadd.f32 %v351, 1.0
    %v368 = vmul.f32 %v352, 0.5
    %v369 = vmul.f32 %v353, 0.5
    %v370 = vmul.f32 %v354, 0.5
    %v371 = vmul.f32 %v355, 0.5
    %v372 = vmul.f32 %v356, 0.5
    %v373 = vmul.f32 %v357, 0.5
    %v374 = vmul.f32 %v358, 0.5
    %v375 = vmul.f32 %v359, 0.5
    %v376 = vmul.f32 %v360, 0.5
    %v377 = vmul.f32 %v361, 0.5
    %v378 = vmul.f32 %v362, 0.5
    %v379 = vmul.f32 %v363, 0.5
    %v380 = vmul.f32 %v364, 0.5
    %v381 = vmul.f32 %v365, 0.5
    %v382 = vmul.f32 %v366, 0.5
    %v383 = vmul.f32 %v367, 0.5
    %v384 = vmul.f32 %v194, %v368
    %v385 = vmul.f32 %v197, %v369
    %v386 = vmul.f32 %v202, %v370
    %v387 = vmul.f32 %v205, %v371
    %v388 = vmul.f32 %v210, %v372
    %v389 = vmul.f32 %v213, %v373
    %v390 = vmul.f32 %v218, %v374
    %v391 = vmul.f32 %v221, %v375
    %v392 = vmul.f32 %v226, %v376
    %v393 = vmul.f32 %v229, %v377
    %v394 = vmul.f32 %v234, %v378
    %v395 = vmul.f32 %v237, %v379
    %v396 = vmul.f32 %v242, %v380
    %v397 = vmul.f32 %v245, %v381
    %v398 = vmul.f32 %v250, %v382
    %v399 = vmul.f32 %v253, %v383
    %v400 = vpack.c.bf16 %v385, %v384
    %v401 = vpack.c.bf16 %v387, %v386
    %v402 = vpack.c.bf16 %v389, %v388
    %v403 = vpack.c.bf16 %v391, %v390
    %v404 = vpack.c.bf16 %v393, %v392
    %v405 = vpack.c.bf16 %v395, %v394
    %v406 = vpack.c.bf16 %v397, %v396
    %v407 = vpack.c.bf16 %v399, %v398
    %v408 = vld [vmem:[#allocation4] sm:$0xf]
    %v409 = vld [vmem:[#allocation4 + $0x4] sm:$0xf]
    %v410 = vld [vmem:[#allocation4 + $0x8] sm:$0xf]
    %v411 = vld [vmem:[#allocation4 + $0xc] sm:$0xf]
    %v412 = vld [vmem:[#allocation4 + $0x10] sm:$0xf]
    %v413 = vld [vmem:[#allocation4 + $0x14] sm:$0xf]
    %v414 = vld [vmem:[#allocation4 + $0x18] sm:$0xf]
    %v415 = vld [vmem:[#allocation4 + $0x1c] sm:$0xf]
    %v416 = vld [vmem:[#allocation4 + $0x20] sm:$0xf]
    %v417 = vld [vmem:[#allocation4 + $0x24] sm:$0xf]
    %v418 = vld [vmem:[#allocation4 + $0x28] sm:$0xf]
    %v419 = vld [vmem:[#allocation4 + $0x2c] sm:$0xf]
    %v420 = vld [vmem:[#allocation4 + $0x30] sm:$0xf]
    %v421 = vld [vmem:[#allocation4 + $0x34] sm:$0xf]
    %v422 = vld [vmem:[#allocation4 + $0x38] sm:$0xf]
    %v423 = vld [vmem:[#allocation4 + $0x3c] sm:$0xf]
    %v424 = vld [vmem:[%s4] sm:$0x1]
    %v426 = vlaneseq
    %v427 = vshrl.u32 %v426, 7
    %v428 = vsub.s32 0, %v427
    %v429 = vrot.slane %v424, %v428
    %v447 = vunpack.c.l.b16 %v408
    %v448 = vunpack.c.l.b16 %v409
    %v449 = vunpack.c.l.b16 %v410
    %v450 = vunpack.c.l.b16 %v411
    %v451 = vunpack.c.l.b16 %v412
    %v452 = vunpack.c.l.b16 %v413
    %v453 = vunpack.c.l.b16 %v414
    %v454 = vunpack.c.l.b16 %v415
    %v455 = vunpack.c.l.b16 %v416
    %v456 = vunpack.c.l.b16 %v417
    %v457 = vunpack.c.l.b16 %v418
    %v458 = vunpack.c.l.b16 %v419
    %v459 = vunpack.c.l.b16 %v420
    %v460 = vunpack.c.l.b16 %v421
    %v461 = vunpack.c.l.b16 %v422
    %v462 = vunpack.c.l.b16 %v423
    %v463 = vpack.c.b16 %v448, %v447
    %v464 = vpack.c.b16 %v450, %v449
    %v465 = vpack.c.b16 %v452, %v451
    %v466 = vpack.c.b16 %v454, %v453
    %v467 = vpack.c.b16 %v456, %v455
    %v468 = vpack.c.b16 %v458, %v457
    %v469 = vpack.c.b16 %v460, %v459
    %v470 = vpack.c.b16 %v462, %v461
    %479 = vmatprep.subr.bf16.mxu0 0
    %480 = vmatpush1.bf16.msra.mxu0 %v470
    %481 = vmatprep.subr.bf16.mxu0 0
    %482 = vmatpush1.bf16.msra.mxu0 %v469
    %483 = vmatprep.subr.bf16.mxu0 0
    %484 = vmatpush1.bf16.msra.mxu0 %v468
    %485 = vmatprep.subr.bf16.mxu0 0
    %486 = vmatpush1.bf16.msra.mxu0 %v467
    %487 = vmatprep.subr.bf16.mxu0 0
    %488 = vmatpush1.bf16.msra.mxu0 %v466
    %489 = vmatprep.subr.bf16.mxu0 0
    %490 = vmatpush1.bf16.msra.mxu0 %v465
    %491 = vmatprep.subr.bf16.mxu0 0
    %492 = vmatpush1.bf16.msra.mxu0 %v464
    %493 = vmatprep.subr.bf16.mxu0 0
    %494 = vmatpush1.bf16.msra.mxu0 %v463
    %495 = vmatprep.subr.bf16.mxu0 0
    %496 = vmatpush2.bf16.msra.mxu0 0
    %497 = vmatprep.subr.bf16.mxu0 0
    %498 = vmatpush2.bf16.msra.mxu0 0
    %499 = vmatprep.subr.bf16.mxu0 0
    %500 = vmatpush2.bf16.msra.mxu0 0
    %501 = vmatprep.subr.bf16.mxu0 0
    %502 = vmatpush2.bf16.msra.mxu0 0
    %503 = vmatprep.subr.bf16.mxu0 0
    %504 = vmatpush2.bf16.msra.mxu0 0
    %505 = vmatprep.subr.bf16.mxu0 0
    %506 = vmatpush2.bf16.msra.mxu0 0
    %507 = vmatprep.subr.bf16.mxu0 0
    %508 = vmatpush2.bf16.msra.mxu0 0
    %509 = vmatprep.subr.bf16.mxu0 0
    %510 = vmatpush2.bf16.msra.mxu0 0
    %511 = vmatprep.mubr.bf16.mxu0 0
    %512 = vmatmul.mubr.bf16.gmra.mxu0 %v400
    %v513 = vpop.f32.mrf.mxu0
    %v514 = vadd.f32 %v429, %v513
    %v515 = vpop.f32.mrf.mxu0
    %v516 = vpop.f32.mrf.mxu0
    %v517 = vadd.f32 %v429, %v516
    %v518 = vpop.f32.mrf.mxu0
    %519 = vmatprep.mubr.bf16.mxu0 0
    %520 = vmatmul.mubr.bf16.gmra.mxu0 %v401
    %v521 = vpop.f32.mrf.mxu0
    %v522 = vadd.f32 %v429, %v521
    %v523 = vpop.f32.mrf.mxu0
    %v524 = vpop.f32.mrf.mxu0
    %v525 = vadd.f32 %v429, %v524
    %v526 = vpop.f32.mrf.mxu0
    %527 = vmatprep.mubr.bf16.mxu0 0
    %528 = vmatmul.mubr.bf16.gmra.mxu0 %v402
    %v529 = vpop.f32.mrf.mxu0
    %v530 = vadd.f32 %v429, %v529
    %v531 = vpop.f32.mrf.mxu0
    %v532 = vpop.f32.mrf.mxu0
    %v533 = vadd.f32 %v429, %v532
    %v534 = vpop.f32.mrf.mxu0
    %535 = vmatprep.mubr.bf16.mxu0 0
    %536 = vmatmul.mubr.bf16.gmra.mxu0 %v403
    %v537 = vpop.f32.mrf.mxu0
    %v538 = vadd.f32 %v429, %v537
    %v539 = vpop.f32.mrf.mxu0
    %v540 = vpop.f32.mrf.mxu0
    %v541 = vadd.f32 %v429, %v540
    %v542 = vpop.f32.mrf.mxu0
    %543 = vmatprep.mubr.bf16.mxu0 0
    %544 = vmatmul.mubr.bf16.gmra.mxu0 %v404
    %v545 = vpop.f32.mrf.mxu0
    %v546 = vadd.f32 %v429, %v545
    %v547 = vpop.f32.mrf.mxu0
    %v548 = vpop.f32.mrf.mxu0
    %v549 = vadd.f32 %v429, %v548
    %v550 = vpop.f32.mrf.mxu0
    %551 = vmatprep.mubr.bf16.mxu0 0
    %552 = vmatmul.mubr.bf16.gmra.mxu0 %v405
    %v553 = vpop.f32.mrf.mxu0
    %v554 = vadd.f32 %v429, %v553
    %v555 = vpop.f32.mrf.mxu0
    %v556 = vpop.f32.mrf.mxu0
    %v557 = vadd.f32 %v429, %v556
    %v558 = vpop.f32.mrf.mxu0
    %559 = vmatprep.mubr.bf16.mxu0 0
    %560 = vmatmul.mubr.bf16.gmra.mxu0 %v406
    %v561 = vpop.f32.mrf.mxu0
    %v562 = vadd.f32 %v429, %v561
    %v563 = vpop.f32.mrf.mxu0
    %v564 = vpop.f32.mrf.mxu0
    %v565 = vadd.f32 %v429, %v564
    %v566 = vpop.f32.mrf.mxu0
    %567 = vmatprep.mubr.bf16.mxu0 0
    %568 = vmatmul.mubr.bf16.gmra.mxu0 %v407
    %v569 = vpop.f32.mrf.mxu0
    %v570 = vadd.f32 %v429, %v569
    %v571 = vpop.f32.mrf.mxu0
    %v572 = vpop.f32.mrf.mxu0
    %v573 = vadd.f32 %v429, %v572
    %v574 = vpop.f32.mrf.mxu0
    %575 = vdwg.mxu0
    %v576 = vpack.c.bf16 %v517, %v514
    %v577 = vpack.c.bf16 %v525, %v522
    %v578 = vpack.c.bf16 %v533, %v530
    %v579 = vpack.c.bf16 %v541, %v538
    %v580 = vpack.c.bf16 %v549, %v546
    %v581 = vpack.c.bf16 %v557, %v554
    %v582 = vpack.c.bf16 %v565, %v562
    %v583 = vpack.c.bf16 %v573, %v570
    %s584 = scalar_lea.vmem [#allocation2], 64
    %v585 = vld [vmem:[%s584] sm:$0xf]
    %v586 = vld [vmem:[%s584 + $0x4] sm:$0xf]
    %v587 = vld [vmem:[%s584 + $0x8] sm:$0xf]
    %v588 = vld [vmem:[%s584 + $0xc] sm:$0xf]
    %v589 = vld [vmem:[%s584 + $0x10] sm:$0xf]
    %v590 = vld [vmem:[%s584 + $0x14] sm:$0xf]
    %v591 = vld [vmem:[%s584 + $0x18] sm:$0xf]
    %v592 = vld [vmem:[%s584 + $0x1c] sm:$0xf]
    %v593 = vld [vmem:[%s584 + $0x20] sm:$0xf]
    %v594 = vld [vmem:[%s584 + $0x24] sm:$0xf]
    %v595 = vld [vmem:[%s584 + $0x28] sm:$0xf]
    %v596 = vld [vmem:[%s584 + $0x2c] sm:$0xf]
    %v597 = vld [vmem:[%s584 + $0x30] sm:$0xf]
    %v598 = vld [vmem:[%s584 + $0x34] sm:$0xf]
    %v599 = vld [vmem:[%s584 + $0x38] sm:$0xf]
    %v600 = vld [vmem:[%s584 + $0x3c] sm:$0xf]
    %s601 = scalar_lea.vmem %s2, 1
    %v602 = vld [vmem:[%s601] sm:$0x1]
    %v604 = vlaneseq
    %v605 = vshrl.u32 %v604, 7
    %v606 = vsub.s32 0, %v605
    %v607 = vrot.slane %v602, %v606
    %v625 = vunpack.c.l.b16 %v585
    %v626 = vunpack.c.l.b16 %v586
    %v627 = vunpack.c.l.b16 %v587
    %v628 = vunpack.c.l.b16 %v588
    %v629 = vunpack.c.l.b16 %v589
    %v630 = vunpack.c.l.b16 %v590
    %v631 = vunpack.c.l.b16 %v591
    %v632 = vunpack.c.l.b16 %v592
    %v633 = vunpack.c.l.b16 %v593
    %v634 = vunpack.c.l.b16 %v594
    %v635 = vunpack.c.l.b16 %v595
    %v636 = vunpack.c.l.b16 %v596
    %v637 = vunpack.c.l.b16 %v597
    %v638 = vunpack.c.l.b16 %v598
    %v639 = vunpack.c.l.b16 %v599
    %v640 = vunpack.c.l.b16 %v600
    %v641 = vpack.c.b16 %v626, %v625
    %v642 = vpack.c.b16 %v628, %v627
    %v643 = vpack.c.b16 %v630, %v629
    %v644 = vpack.c.b16 %v632, %v631
    %v645 = vpack.c.b16 %v634, %v633
    %v646 = vpack.c.b16 %v636, %v635
    %v647 = vpack.c.b16 %v638, %v637
    %v648 = vpack.c.b16 %v640, %v639
    %657 = vmatprep.subr.bf16.mxu0 0
    %658 = vmatpush1.bf16.msra.mxu0 %v648
    %659 = vmatprep.subr.bf16.mxu0 0
    %660 = vmatpush1.bf16.msra.mxu0 %v647
    %661 = vmatprep.subr.bf16.mxu0 0
    %662 = vmatpush1.bf16.msra.mxu0 %v646
    %663 = vmatprep.subr.bf16.mxu0 0
    %664 = vmatpush1.bf16.msra.mxu0 %v645
    %665 = vmatprep.subr.bf16.mxu0 0
    %666 = vmatpush1.bf16.msra.mxu0 %v644
    %667 = vmatprep.subr.bf16.mxu0 0
    %668 = vmatpush1.bf16.msra.mxu0 %v643
    %669 = vmatprep.subr.bf16.mxu0 0
    %670 = vmatpush1.bf16.msra.mxu0 %v642
    %671 = vmatprep.subr.bf16.mxu0 0
    %672 = vmatpush1.bf16.msra.mxu0 %v641
    %673 = vmatprep.subr.bf16.mxu0 0
    %674 = vmatpush2.bf16.msra.mxu0 0
    %675 = vmatprep.subr.bf16.mxu0 0
    %676 = vmatpush2.bf16.msra.mxu0 0
    %677 = vmatprep.subr.bf16.mxu0 0
    %678 = vmatpush2.bf16.msra.mxu0 0
    %679 = vmatprep.subr.bf16.mxu0 0
    %680 = vmatpush2.bf16.msra.mxu0 0
    %681 = vmatprep.subr.bf16.mxu0 0
    %682 = vmatpush2.bf16.msra.mxu0 0
    %683 = vmatprep.subr.bf16.mxu0 0
    %684 = vmatpush2.bf16.msra.mxu0 0
    %685 = vmatprep.subr.bf16.mxu0 0
    %686 = vmatpush2.bf16.msra.mxu0 0
    %687 = vmatprep.subr.bf16.mxu0 0
    %688 = vmatpush2.bf16.msra.mxu0 0
    %689 = vmatprep.mubr.bf16.mxu0 0
    %690 = vmatmul.mubr.bf16.gmra.mxu0 %v576
    %v691 = vpop.f32.mrf.mxu0
    %v692 = vadd.f32 %v607, %v691
    %v693 = vpop.f32.mrf.mxu0
    %v694 = vpop.f32.mrf.mxu0
    %v695 = vadd.f32 %v607, %v694
    %v696 = vpop.f32.mrf.mxu0
    %697 = vmatprep.mubr.bf16.mxu0 0
    %698 = vmatmul.mubr.bf16.gmra.mxu0 %v577
    %v699 = vpop.f32.mrf.mxu0
    %v700 = vadd.f32 %v607, %v699
    %v701 = vpop.f32.mrf.mxu0
    %v702 = vpop.f32.mrf.mxu0
    %v703 = vadd.f32 %v607, %v702
    %v704 = vpop.f32.mrf.mxu0
    %705 = vmatprep.mubr.bf16.mxu0 0
    %706 = vmatmul.mubr.bf16.gmra.mxu0 %v578
    %v707 = vpop.f32.mrf.mxu0
    %v708 = vadd.f32 %v607, %v707
    %v709 = vpop.f32.mrf.mxu0
    %v710 = vpop.f32.mrf.mxu0
    %v711 = vadd.f32 %v607, %v710
    %v712 = vpop.f32.mrf.mxu0
    %713 = vmatprep.mubr.bf16.mxu0 0
    %714 = vmatmul.mubr.bf16.gmra.mxu0 %v579
    %v715 = vpop.f32.mrf.mxu0
    %v716 = vadd.f32 %v607, %v715
    %v717 = vpop.f32.mrf.mxu0
    %v718 = vpop.f32.mrf.mxu0
    %v719 = vadd.f32 %v607, %v718
    %v720 = vpop.f32.mrf.mxu0
    %721 = vmatprep.mubr.bf16.mxu0 0
    %722 = vmatmul.mubr.bf16.gmra.mxu0 %v580
    %v723 = vpop.f32.mrf.mxu0
    %v724 = vadd.f32 %v607, %v723
    %v725 = vpop.f32.mrf.mxu0
    %v726 = vpop.f32.mrf.mxu0
    %v727 = vadd.f32 %v607, %v726
    %v728 = vpop.f32.mrf.mxu0
    %729 = vmatprep.mubr.bf16.mxu0 0
    %730 = vmatmul.mubr.bf16.gmra.mxu0 %v581
    %v731 = vpop.f32.mrf.mxu0
    %v732 = vadd.f32 %v607, %v731
    %v733 = vpop.f32.mrf.mxu0
    %v734 = vpop.f32.mrf.mxu0
    %v735 = vadd.f32 %v607, %v734
    %v736 = vpop.f32.mrf.mxu0
    %737 = vmatprep.mubr.bf16.mxu0 0
    %738 = vmatmul.mubr.bf16.gmra.mxu0 %v582
    %v739 = vpop.f32.mrf.mxu0
    %v740 = vadd.f32 %v607, %v739
    %v741 = vpop.f32.mrf.mxu0
    %v742 = vpop.f32.mrf.mxu0
    %v743 = vadd.f32 %v607, %v742
    %v744 = vpop.f32.mrf.mxu0
    %745 = vmatprep.mubr.bf16.mxu0 0
    %746 = vmatmul.mubr.bf16.gmra.mxu0 %v583
    %v747 = vpop.f32.mrf.mxu0
    %v748 = vadd.f32 %v607, %v747
    %v749 = vpop.f32.mrf.mxu0
    %v750 = vpop.f32.mrf.mxu0
    %v751 = vadd.f32 %v607, %v750
    %v752 = vpop.f32.mrf.mxu0
    %753 = vdwg.mxu0
    %v754 = vmul.f32 %v692, %v692
    %v755 = vmul.f32 %v695, %v695
    %v756 = vmul.f32 %v700, %v700
    %v757 = vmul.f32 %v703, %v703
    %v758 = vmul.f32 %v708, %v708
    %v759 = vmul.f32 %v711, %v711
    %v760 = vmul.f32 %v716, %v716
    %v761 = vmul.f32 %v719, %v719
    %v762 = vmul.f32 %v724, %v724
    %v763 = vmul.f32 %v727, %v727
    %v764 = vmul.f32 %v732, %v732
    %v765 = vmul.f32 %v735, %v735
    %v766 = vmul.f32 %v740, %v740
    %v767 = vmul.f32 %v743, %v743
    %v768 = vmul.f32 %v748, %v748
    %v769 = vmul.f32 %v751, %v751
    %v770 = vmul.f32 %v692, %v754
    %v771 = vmul.f32 %v695, %v755
    %v772 = vmul.f32 %v700, %v756
    %v773 = vmul.f32 %v703, %v757
    %v774 = vmul.f32 %v708, %v758
    %v775 = vmul.f32 %v711, %v759
    %v776 = vmul.f32 %v716, %v760
    %v777 = vmul.f32 %v719, %v761
    %v778 = vmul.f32 %v724, %v762
    %v779 = vmul.f32 %v727, %v763
    %v780 = vmul.f32 %v732, %v764
    %v781 = vmul.f32 %v735, %v765
    %v782 = vmul.f32 %v740, %v766
    %v783 = vmul.f32 %v743, %v767
    %v784 = vmul.f32 %v748, %v768
    %v785 = vmul.f32 %v751, %v769
    %v786 = vmul.f32 %v770, 0.044715
    %v787 = vmul.f32 %v771, 0.044715
    %v788 = vmul.f32 %v772, 0.044715
    %v789 = vmul.f32 %v773, 0.044715
    %v790 = vmul.f32 %v774, 0.044715
    %v791 = vmul.f32 %v775, 0.044715
    %v792 = vmul.f32 %v776, 0.044715
    %v793 = vmul.f32 %v777, 0.044715
    %v794 = vmul.f32 %v778, 0.044715
    %v795 = vmul.f32 %v779, 0.044715
    %v796 = vmul.f32 %v780, 0.044715
    %v797 = vmul.f32 %v781, 0.044715
    %v798 = vmul.f32 %v782, 0.044715
    %v799 = vmul.f32 %v783, 0.044715
    %v800 = vmul.f32 %v784, 0.044715
    %v801 = vmul.f32 %v785, 0.044715
    %v802 = vadd.f32 %v692, %v786
    %v803 = vadd.f32 %v695, %v787
    %v804 = vadd.f32 %v700, %v788
    %v805 = vadd.f32 %v703, %v789
    %v806 = vadd.f32 %v708, %v790
    %v807 = vadd.f32 %v711, %v791
    %v808 = vadd.f32 %v716, %v792
    %v809 = vadd.f32 %v719, %v793
    %v810 = vadd.f32 %v724, %v794
    %v811 = vadd.f32 %v727, %v795
    %v812 = vadd.f32 %v732, %v796
    %v813 = vadd.f32 %v735, %v797
    %v814 = vadd.f32 %v740, %v798
    %v815 = vadd.f32 %v743, %v799
    %v816 = vadd.f32 %v748, %v800
    %v817 = vadd.f32 %v751, %v801
    %v818 = vmul.f32 %v802, 0.7978846
    %v819 = vmul.f32 %v803, 0.7978846
    %v820 = vmul.f32 %v804, 0.7978846
    %v821 = vmul.f32 %v805, 0.7978846
    %v822 = vmul.f32 %v806, 0.7978846
    %v823 = vmul.f32 %v807, 0.7978846
    %v824 = vmul.f32 %v808, 0.7978846
    %v825 = vmul.f32 %v809, 0.7978846
    %v826 = vmul.f32 %v810, 0.7978846
    %v827 = vmul.f32 %v811, 0.7978846
    %v828 = vmul.f32 %v812, 0.7978846
    %v829 = vmul.f32 %v813, 0.7978846
    %v830 = vmul.f32 %v814, 0.7978846
    %v831 = vmul.f32 %v815, 0.7978846
    %v832 = vmul.f32 %v816, 0.7978846
    %v833 = vmul.f32 %v817, 0.7978846
    %v834 = vtanh.pop %v818
    %v835 = vtanh.pop %v819
    %v836 = vtanh.pop %v820
    %v837 = vtanh.pop %v821
    %v838 = vtanh.pop %v822
    %v839 = vtanh.pop %v823
    %v840 = vtanh.pop %v824
    %v841 = vtanh.pop %v825
    %v842 = vtanh.pop %v826
    %v843 = vtanh.pop %v827
    %v844 = vtanh.pop %v828
    %v845 = vtanh.pop %v829
    %v846 = vtanh.pop %v830
    %v847 = vtanh.pop %v831
    %v848 = vtanh.pop %v832
    %v849 = vtanh.pop %v833
    %v850 = vadd.f32 %v834, 1.0
    %v851 = vadd.f32 %v835, 1.0
    %v852 = vadd.f32 %v836, 1.0
    %v853 = vadd.f32 %v837, 1.0
    %v854 = vadd.f32 %v838, 1.0
    %v855 = vadd.f32 %v839, 1.0
    %v856 = vadd.f32 %v840, 1.0
    %v857 = vadd.f32 %v841, 1.0
    %v858 = vadd.f32 %v842, 1.0
    %v859 = vadd.f32 %v843, 1.0
    %v860 = vadd.f32 %v844, 1.0
    %v861 = vadd.f32 %v845, 1.0
    %v862 = vadd.f32 %v846, 1.0
    %v863 = vadd.f32 %v847, 1.0
    %v864 = vadd.f32 %v848, 1.0
    %v865 = vadd.f32 %v849, 1.0
    %v866 = vmul.f32 %v850, 0.5
    %v867 = vmul.f32 %v851, 0.5
    %v868 = vmul.f32 %v852, 0.5
    %v869 = vmul.f32 %v853, 0.5
    %v870 = vmul.f32 %v854, 0.5
    %v871 = vmul.f32 %v855, 0.5
    %v872 = vmul.f32 %v856, 0.5
    %v873 = vmul.f32 %v857, 0.5
    %v874 = vmul.f32 %v858, 0.5
    %v875 = vmul.f32 %v859, 0.5
    %v876 = vmul.f32 %v860, 0.5
    %v877 = vmul.f32 %v861, 0.5
    %v878 = vmul.f32 %v862, 0.5
    %v879 = vmul.f32 %v863, 0.5
    %v880 = vmul.f32 %v864, 0.5
    %v881 = vmul.f32 %v865, 0.5
    %v882 = vmul.f32 %v692, %v866
    %v883 = vmul.f32 %v695, %v867
    %v884 = vmul.f32 %v700, %v868
    %v885 = vmul.f32 %v703, %v869
    %v886 = vmul.f32 %v708, %v870
    %v887 = vmul.f32 %v711, %v871
    %v888 = vmul.f32 %v716, %v872
    %v889 = vmul.f32 %v719, %v873
    %v890 = vmul.f32 %v724, %v874
    %v891 = vmul.f32 %v727, %v875
    %v892 = vmul.f32 %v732, %v876
    %v893 = vmul.f32 %v735, %v877
    %v894 = vmul.f32 %v740, %v878
    %v895 = vmul.f32 %v743, %v879
    %v896 = vmul.f32 %v748, %v880
    %v897 = vmul.f32 %v751, %v881
    %v898 = vpack.c.bf16 %v883, %v882
    %v899 = vpack.c.bf16 %v885, %v884
    %v900 = vpack.c.bf16 %v887, %v886
    %v901 = vpack.c.bf16 %v889, %v888
    %v902 = vpack.c.bf16 %v891, %v890
    %v903 = vpack.c.bf16 %v893, %v892
    %v904 = vpack.c.bf16 %v895, %v894
    %v905 = vpack.c.bf16 %v897, %v896
    %s906 = scalar_lea.vmem [#allocation4], 64
    %v907 = vld [vmem:[%s906] sm:$0xf]
    %v908 = vld [vmem:[%s906 + $0x4] sm:$0xf]
    %v909 = vld [vmem:[%s906 + $0x8] sm:$0xf]
    %v910 = vld [vmem:[%s906 + $0xc] sm:$0xf]
    %v911 = vld [vmem:[%s906 + $0x10] sm:$0xf]
    %v912 = vld [vmem:[%s906 + $0x14] sm:$0xf]
    %v913 = vld [vmem:[%s906 + $0x18] sm:$0xf]
    %v914 = vld [vmem:[%s906 + $0x1c] sm:$0xf]
    %v915 = vld [vmem:[%s906 + $0x20] sm:$0xf]
    %v916 = vld [vmem:[%s906 + $0x24] sm:$0xf]
    %v917 = vld [vmem:[%s906 + $0x28] sm:$0xf]
    %v918 = vld [vmem:[%s906 + $0x2c] sm:$0xf]
    %v919 = vld [vmem:[%s906 + $0x30] sm:$0xf]
    %v920 = vld [vmem:[%s906 + $0x34] sm:$0xf]
    %v921 = vld [vmem:[%s906 + $0x38] sm:$0xf]
    %v922 = vld [vmem:[%s906 + $0x3c] sm:$0xf]
    %s923 = scalar_lea.vmem %s4, 1
    %v924 = vld [vmem:[%s923] sm:$0x1]
    %v926 = vlaneseq
    %v927 = vshrl.u32 %v926, 7
    %v928 = vsub.s32 0, %v927
    %v929 = vrot.slane %v924, %v928
    %v947 = vunpack.c.l.b16 %v907
    %v948 = vunpack.c.l.b16 %v908
    %v949 = vunpack.c.l.b16 %v909
    %v950 = vunpack.c.l.b16 %v910
    %v951 = vunpack.c.l.b16 %v911
    %v952 = vunpack.c.l.b16 %v912
    %v953 = vunpack.c.l.b16 %v913
    %v954 = vunpack.c.l.b16 %v914
    %v955 = vunpack.c.l.b16 %v915
    %v956 = vunpack.c.l.b16 %v916
    %v957 = vunpack.c.l.b16 %v917
    %v958 = vunpack.c.l.b16 %v918
    %v959 = vunpack.c.l.b16 %v919
    %v960 = vunpack.c.l.b16 %v920
    %v961 = vunpack.c.l.b16 %v921
    %v962 = vunpack.c.l.b16 %v922
    %v963 = vpack.c.b16 %v948, %v947
    %v964 = vpack.c.b16 %v950, %v949
    %v965 = vpack.c.b16 %v952, %v951
    %v966 = vpack.c.b16 %v954, %v953
    %v967 = vpack.c.b16 %v956, %v955
    %v968 = vpack.c.b16 %v958, %v957
    %v969 = vpack.c.b16 %v960, %v959
    %v970 = vpack.c.b16 %v962, %v961
    %979 = vmatprep.subr.bf16.mxu0 0
    %980 = vmatpush1.bf16.msra.mxu0 %v970
    %981 = vmatprep.subr.bf16.mxu0 0
    %982 = vmatpush1.bf16.msra.mxu0 %v969
    %983 = vmatprep.subr.bf16.mxu0 0
    %984 = vmatpush1.bf16.msra.mxu0 %v968
    %985 = vmatprep.subr.bf16.mxu0 0
    %986 = vmatpush1.bf16.msra.mxu0 %v967
    %987 = vmatprep.subr.bf16.mxu0 0
    %988 = vmatpush1.bf16.msra.mxu0 %v966
    %989 = vmatprep.subr.bf16.mxu0 0
    %990 = vmatpush1.bf16.msra.mxu0 %v965
    %991 = vmatprep.subr.bf16.mxu0 0
    %992 = vmatpush1.bf16.msra.mxu0 %v964
    %993 = vmatprep.subr.bf16.mxu0 0
    %994 = vmatpush1.bf16.msra.mxu0 %v963
    %995 = vmatprep.subr.bf16.mxu0 0
    %996 = vmatpush2.bf16.msra.mxu0 0
    %997 = vmatprep.subr.bf16.mxu0 0
    %998 = vmatpush2.bf16.msra.mxu0 0
    %999 = vmatprep.subr.bf16.mxu0 0
    %1000 = vmatpush2.bf16.msra.mxu0 0
    %1001 = vmatprep.subr.bf16.mxu0 0
    %1002 = vmatpush2.bf16.msra.mxu0 0
    %1003 = vmatprep.subr.bf16.mxu0 0
    %1004 = vmatpush2.bf16.msra.mxu0 0
    %1005 = vmatprep.subr.bf16.mxu0 0
    %1006 = vmatpush2.bf16.msra.mxu0 0
    %1007 = vmatprep.subr.bf16.mxu0 0
    %1008 = vmatpush2.bf16.msra.mxu0 0
    %1009 = vmatprep.subr.bf16.mxu0 0
    %1010 = vmatpush2.bf16.msra.mxu0 0
    %1011 = vmatprep.mubr.bf16.mxu0 0
    %1012 = vmatmul.mubr.bf16.gmra.mxu0 %v898
    %v1013 = vpop.f32.mrf.mxu0
    %v1014 = vadd.f32 %v929, %v1013
    %v1015 = vpop.f32.mrf.mxu0
    %v1016 = vpop.f32.mrf.mxu0
    %v1017 = vadd.f32 %v929, %v1016
    %v1018 = vpop.f32.mrf.mxu0
    %1019 = vmatprep.mubr.bf16.mxu0 0
    %1020 = vmatmul.mubr.bf16.gmra.mxu0 %v899
    %v1021 = vpop.f32.mrf.mxu0
    %v1022 = vadd.f32 %v929, %v1021
    %v1023 = vpop.f32.mrf.mxu0
    %v1024 = vpop.f32.mrf.mxu0
    %v1025 = vadd.f32 %v929, %v1024
    %v1026 = vpop.f32.mrf.mxu0
    %1027 = vmatprep.mubr.bf16.mxu0 0
    %1028 = vmatmul.mubr.bf16.gmra.mxu0 %v900
    %v1029 = vpop.f32.mrf.mxu0
    %v1030 = vadd.f32 %v929, %v1029
    %v1031 = vpop.f32.mrf.mxu0
    %v1032 = vpop.f32.mrf.mxu0
    %v1033 = vadd.f32 %v929, %v1032
    %v1034 = vpop.f32.mrf.mxu0
    %1035 = vmatprep.mubr.bf16.mxu0 0
    %1036 = vmatmul.mubr.bf16.gmra.mxu0 %v901
    %v1037 = vpop.f32.mrf.mxu0
    %v1038 = vadd.f32 %v929, %v1037
    %v1039 = vpop.f32.mrf.mxu0
    %v1040 = vpop.f32.mrf.mxu0
    %v1041 = vadd.f32 %v929, %v1040
    %v1042 = vpop.f32.mrf.mxu0
    %1043 = vmatprep.mubr.bf16.mxu0 0
    %1044 = vmatmul.mubr.bf16.gmra.mxu0 %v902
    %v1045 = vpop.f32.mrf.mxu0
    %v1046 = vadd.f32 %v929, %v1045
    %v1047 = vpop.f32.mrf.mxu0
    %v1048 = vpop.f32.mrf.mxu0
    %v1049 = vadd.f32 %v929, %v1048
    %v1050 = vpop.f32.mrf.mxu0
    %1051 = vmatprep.mubr.bf16.mxu0 0
    %1052 = vmatmul.mubr.bf16.gmra.mxu0 %v903
    %v1053 = vpop.f32.mrf.mxu0
    %v1054 = vadd.f32 %v929, %v1053
    %v1055 = vpop.f32.mrf.mxu0
    %v1056 = vpop.f32.mrf.mxu0
    %v1057 = vadd.f32 %v929, %v1056
    %v1058 = vpop.f32.mrf.mxu0
    %1059 = vmatprep.mubr.bf16.mxu0 0
    %1060 = vmatmul.mubr.bf16.gmra.mxu0 %v904
    %v1061 = vpop.f32.mrf.mxu0
    %v1062 = vadd.f32 %v929, %v1061
    %v1063 = vpop.f32.mrf.mxu0
    %v1064 = vpop.f32.mrf.mxu0
    %v1065 = vadd.f32 %v929, %v1064
    %v1066 = vpop.f32.mrf.mxu0
    %1067 = vmatprep.mubr.bf16.mxu0 0
    %1068 = vmatmul.mubr.bf16.gmra.mxu0 %v905
    %v1069 = vpop.f32.mrf.mxu0
    %v1070 = vadd.f32 %v929, %v1069
    %v1071 = vpop.f32.mrf.mxu0
    %v1072 = vpop.f32.mrf.mxu0
    %v1073 = vadd.f32 %v929, %v1072
    %v1074 = vpop.f32.mrf.mxu0
    %1075 = vdwg.mxu0
    %v1076 = vpack.c.bf16 %v1017, %v1014
    %v1077 = vpack.c.bf16 %v1025, %v1022
    %v1078 = vpack.c.bf16 %v1033, %v1030
    %v1079 = vpack.c.bf16 %v1041, %v1038
    %v1080 = vpack.c.bf16 %v1049, %v1046
    %v1081 = vpack.c.bf16 %v1057, %v1054
    %v1082 = vpack.c.bf16 %v1065, %v1062
    %v1083 = vpack.c.bf16 %v1073, %v1070
    %s1084 = scalar_lea.vmem [#allocation2], 128
    %v1085 = vld [vmem:[%s1084] sm:$0xf]
    %v1086 = vld [vmem:[%s1084 + $0x4] sm:$0xf]
    %v1087 = vld [vmem:[%s1084 + $0x8] sm:$0xf]
    %v1088 = vld [vmem:[%s1084 + $0xc] sm:$0xf]
    %v1089 = vld [vmem:[%s1084 + $0x10] sm:$0xf]
    %v1090 = vld [vmem:[%s1084 + $0x14] sm:$0xf]
    %v1091 = vld [vmem:[%s1084 + $0x18] sm:$0xf]
    %v1092 = vld [vmem:[%s1084 + $0x1c] sm:$0xf]
    %v1093 = vld [vmem:[%s1084 + $0x20] sm:$0xf]
    %v1094 = vld [vmem:[%s1084 + $0x24] sm:$0xf]
    %v1095 = vld [vmem:[%s1084 + $0x28] sm:$0xf]
    %v1096 = vld [vmem:[%s1084 + $0x2c] sm:$0xf]
    %v1097 = vld [vmem:[%s1084 + $0x30] sm:$0xf]
    %v1098 = vld [vmem:[%s1084 + $0x34] sm:$0xf]
    %v1099 = vld [vmem:[%s1084 + $0x38] sm:$0xf]
    %v1100 = vld [vmem:[%s1084 + $0x3c] sm:$0xf]
    %s1101 = scalar_lea.vmem %s2, 2
    %v1102 = vld [vmem:[%s1101] sm:$0x1]
    %v1104 = vlaneseq
    %v1105 = vshrl.u32 %v1104, 7
    %v1106 = vsub.s32 0, %v1105
    %v1107 = vrot.slane %v1102, %v1106
    %v1125 = vunpack.c.l.b16 %v1085
    %v1126 = vunpack.c.l.b16 %v1086
    %v1127 = vunpack.c.l.b16 %v1087
    %v1128 = vunpack.c.l.b16 %v1088
    %v1129 = vunpack.c.l.b16 %v1089
    %v1130 = vunpack.c.l.b16 %v1090
    %v1131 = vunpack.c.l.b16 %v1091
    %v1132 = vunpack.c.l.b16 %v1092
    %v1133 = vunpack.c.l.b16 %v1093
    %v1134 = vunpack.c.l.b16 %v1094
    %v1135 = vunpack.c.l.b16 %v1095
    %v1136 = vunpack.c.l.b16 %v1096
    %v1137 = vunpack.c.l.b16 %v1097
    %v1138 = vunpack.c.l.b16 %v1098
    %v1139 = vunpack.c.l.b16 %v1099
    %v1140 = vunpack.c.l.b16 %v1100
    %v1141 = vpack.c.b16 %v1126, %v1125
    %v1142 = vpack.c.b16 %v1128, %v1127
    %v1143 = vpack.c.b16 %v1130, %v1129
    %v1144 = vpack.c.b16 %v1132, %v1131
    %v1145 = vpack.c.b16 %v1134, %v1133
    %v1146 = vpack.c.b16 %v1136, %v1135
    %v1147 = vpack.c.b16 %v1138, %v1137
    %v1148 = vpack.c.b16 %v1140, %v1139
    %1157 = vmatprep.subr.bf16.mxu0 0
    %1158 = vmatpush1.bf16.msra.mxu0 %v1148
    %1159 = vmatprep.subr.bf16.mxu0 0
    %1160 = vmatpush1.bf16.msra.mxu0 %v1147
    %1161 = vmatprep.subr.bf16.mxu0 0
    %1162 = vmatpush1.bf16.msra.mxu0 %v1146
    %1163 = vmatprep.subr.bf16.mxu0 0
    %1164 = vmatpush1.bf16.msra.mxu0 %v1145
    %1165 = vmatprep.subr.bf16.mxu0 0
    %1166 = vmatpush1.bf16.msra.mxu0 %v1144
    %1167 = vmatprep.subr.bf16.mxu0 0
    %1168 = vmatpush1.bf16.msra.mxu0 %v1143
    %1169 = vmatprep.subr.bf16.mxu0 0
    %1170 = vmatpush1.bf16.msra.mxu0 %v1142
    %1171 = vmatprep.subr.bf16.mxu0 0
    %1172 = vmatpush1.bf16.msra.mxu0 %v1141
    %1173 = vmatprep.subr.bf16.mxu0 0
    %1174 = vmatpush2.bf16.msra.mxu0 0
    %1175 = vmatprep.subr.bf16.mxu0 0
    %1176 = vmatpush2.bf16.msra.mxu0 0
    %1177 = vmatprep.subr.bf16.mxu0 0
    %1178 = vmatpush2.bf16.msra.mxu0 0
    %1179 = vmatprep.subr.bf16.mxu0 0
    %1180 = vmatpush2.bf16.msra.mxu0 0
    %1181 = vmatprep.subr.bf16.mxu0 0
    %1182 = vmatpush2.bf16.msra.mxu0 0
    %1183 = vmatprep.subr.bf16.mxu0 0
    %1184 = vmatpush2.bf16.msra.mxu0 0
    %1185 = vmatprep.subr.bf16.mxu0 0
    %1186 = vmatpush2.bf16.msra.mxu0 0
    %1187 = vmatprep.subr.bf16.mxu0 0
    %1188 = vmatpush2.bf16.msra.mxu0 0
    %1189 = vmatprep.mubr.bf16.mxu0 0
    %1190 = vmatmul.mubr.bf16.gmra.mxu0 %v1076
    %v1191 = vpop.f32.mrf.mxu0
    %v1192 = vadd.f32 %v1107, %v1191
    %v1193 = vpop.f32.mrf.mxu0
    %v1194 = vpop.f32.mrf.mxu0
    %v1195 = vadd.f32 %v1107, %v1194
    %v1196 = vpop.f32.mrf.mxu0
    %1197 = vmatprep.mubr.bf16.mxu0 0
    %1198 = vmatmul.mubr.bf16.gmra.mxu0 %v1077
    %v1199 = vpop.f32.mrf.mxu0
    %v1200 = vadd.f32 %v1107, %v1199
    %v1201 = vpop.f32.mrf.mxu0
    %v1202 = vpop.f32.mrf.mxu0
    %v1203 = vadd.f32 %v1107, %v1202
    %v1204 = vpop.f32.mrf.mxu0
    %1205 = vmatprep.mubr.bf16.mxu0 0
    %1206 = vmatmul.mubr.bf16.gmra.mxu0 %v1078
    %v1207 = vpop.f32.mrf.mxu0
    %v1208 = vadd.f32 %v1107, %v1207
    %v1209 = vpop.f32.mrf.mxu0
    %v1210 = vpop.f32.mrf.mxu0
    %v1211 = vadd.f32 %v1107, %v1210
    %v1212 = vpop.f32.mrf.mxu0
    %1213 = vmatprep.mubr.bf16.mxu0 0
    %1214 = vmatmul.mubr.bf16.gmra.mxu0 %v1079
    %v1215 = vpop.f32.mrf.mxu0
    %v1216 = vadd.f32 %v1107, %v1215
    %v1217 = vpop.f32.mrf.mxu0
    %v1218 = vpop.f32.mrf.mxu0
    %v1219 = vadd.f32 %v1107, %v1218
    %v1220 = vpop.f32.mrf.mxu0
    %1221 = vmatprep.mubr.bf16.mxu0 0
    %1222 = vmatmul.mubr.bf16.gmra.mxu0 %v1080
    %v1223 = vpop.f32.mrf.mxu0
    %v1224 = vadd.f32 %v1107, %v1223
    %v1225 = vpop.f32.mrf.mxu0
    %v1226 = vpop.f32.mrf.mxu0
    %v1227 = vadd.f32 %v1107, %v1226
    %v1228 = vpop.f32.mrf.mxu0
    %1229 = vmatprep.mubr.bf16.mxu0 0
    %1230 = vmatmul.mubr.bf16.gmra.mxu0 %v1081
    %v1231 = vpop.f32.mrf.mxu0
    %v1232 = vadd.f32 %v1107, %v1231
    %v1233 = vpop.f32.mrf.mxu0
    %v1234 = vpop.f32.mrf.mxu0
    %v1235 = vadd.f32 %v1107, %v1234
    %v1236 = vpop.f32.mrf.mxu0
    %1237 = vmatprep.mubr.bf16.mxu0 0
    %1238 = vmatmul.mubr.bf16.gmra.mxu0 %v1082
    %v1239 = vpop.f32.mrf.mxu0
    %v1240 = vadd.f32 %v1107, %v1239
    %v1241 = vpop.f32.mrf.mxu0
    %v1242 = vpop.f32.mrf.mxu0
    %v1243 = vadd.f32 %v1107, %v1242
    %v1244 = vpop.f32.mrf.mxu0
    %1245 = vmatprep.mubr.bf16.mxu0 0
    %1246 = vmatmul.mubr.bf16.gmra.mxu0 %v1083
    %v1247 = vpop.f32.mrf.mxu0
    %v1248 = vadd.f32 %v1107, %v1247
    %v1249 = vpop.f32.mrf.mxu0
    %v1250 = vpop.f32.mrf.mxu0
    %v1251 = vadd.f32 %v1107, %v1250
    %v1252 = vpop.f32.mrf.mxu0
    %1253 = vdwg.mxu0
    %v1254 = vmul.f32 %v1192, %v1192
    %v1255 = vmul.f32 %v1195, %v1195
    %v1256 = vmul.f32 %v1200, %v1200
    %v1257 = vmul.f32 %v1203, %v1203
    %v1258 = vmul.f32 %v1208, %v1208
    %v1259 = vmul.f32 %v1211, %v1211
    %v1260 = vmul.f32 %v1216, %v1216
    %v1261 = vmul.f32 %v1219, %v1219
    %v1262 = vmul.f32 %v1224, %v1224
    %v1263 = vmul.f32 %v1227, %v1227
    %v1264 = vmul.f32 %v1232, %v1232
    %v1265 = vmul.f32 %v1235, %v1235
    %v1266 = vmul.f32 %v1240, %v1240
    %v1267 = vmul.f32 %v1243, %v1243
    %v1268 = vmul.f32 %v1248, %v1248
    %v1269 = vmul.f32 %v1251, %v1251
    %v1270 = vmul.f32 %v1192, %v1254
    %v1271 = vmul.f32 %v1195, %v1255
    %v1272 = vmul.f32 %v1200, %v1256
    %v1273 = vmul.f32 %v1203, %v1257
    %v1274 = vmul.f32 %v1208, %v1258
    %v1275 = vmul.f32 %v1211, %v1259
    %v1276 = vmul.f32 %v1216, %v1260
    %v1277 = vmul.f32 %v1219, %v1261
    %v1278 = vmul.f32 %v1224, %v1262
    %v1279 = vmul.f32 %v1227, %v1263
    %v1280 = vmul.f32 %v1232, %v1264
    %v1281 = vmul.f32 %v1235, %v1265
    %v1282 = vmul.f32 %v1240, %v1266
    %v1283 = vmul.f32 %v1243, %v1267
    %v1284 = vmul.f32 %v1248, %v1268
    %v1285 = vmul.f32 %v1251, %v1269
    %v1286 = vmul.f32 %v1270, 0.044715
    %v1287 = vmul.f32 %v1271, 0.044715
    %v1288 = vmul.f32 %v1272, 0.044715
    %v1289 = vmul.f32 %v1273, 0.044715
    %v1290 = vmul.f32 %v1274, 0.044715
    %v1291 = vmul.f32 %v1275, 0.044715
    %v1292 = vmul.f32 %v1276, 0.044715
    %v1293 = vmul.f32 %v1277, 0.044715
    %v1294 = vmul.f32 %v1278, 0.044715
    %v1295 = vmul.f32 %v1279, 0.044715
    %v1296 = vmul.f32 %v1280, 0.044715
    %v1297 = vmul.f32 %v1281, 0.044715
    %v1298 = vmul.f32 %v1282, 0.044715
    %v1299 = vmul.f32 %v1283, 0.044715
    %v1300 = vmul.f32 %v1284, 0.044715
    %v1301 = vmul.f32 %v1285, 0.044715
    %v1302 = vadd.f32 %v1192, %v1286
    %v1303 = vadd.f32 %v1195, %v1287
    %v1304 = vadd.f32 %v1200, %v1288
    %v1305 = vadd.f32 %v1203, %v1289
    %v1306 = vadd.f32 %v1208, %v1290
    %v1307 = vadd.f32 %v1211, %v1291
    %v1308 = vadd.f32 %v1216, %v1292
    %v1309 = vadd.f32 %v1219, %v1293
    %v1310 = vadd.f32 %v1224, %v1294
    %v1311 = vadd.f32 %v1227, %v1295
    %v1312 = vadd.f32 %v1232, %v1296
    %v1313 = vadd.f32 %v1235, %v1297
    %v1314 = vadd.f32 %v1240, %v1298
    %v1315 = vadd.f32 %v1243, %v1299
    %v1316 = vadd.f32 %v1248, %v1300
    %v1317 = vadd.f32 %v1251, %v1301
    %v1318 = vmul.f32 %v1302, 0.7978846
    %v1319 = vmul.f32 %v1303, 0.7978846
    %v1320 = vmul.f32 %v1304, 0.7978846
    %v1321 = vmul.f32 %v1305, 0.7978846
    %v1322 = vmul.f32 %v1306, 0.7978846
    %v1323 = vmul.f32 %v1307, 0.7978846
    %v1324 = vmul.f32 %v1308, 0.7978846
    %v1325 = vmul.f32 %v1309, 0.7978846
    %v1326 = vmul.f32 %v1310, 0.7978846
    %v1327 = vmul.f32 %v1311, 0.7978846
    %v1328 = vmul.f32 %v1312, 0.7978846
    %v1329 = vmul.f32 %v1313, 0.7978846
    %v1330 = vmul.f32 %v1314, 0.7978846
    %v1331 = vmul.f32 %v1315, 0.7978846
    %v1332 = vmul.f32 %v1316, 0.7978846
    %v1333 = vmul.f32 %v1317, 0.7978846
    %v1334 = vtanh.pop %v1318
    %v1335 = vtanh.pop %v1319
    %v1336 = vtanh.pop %v1320
    %v1337 = vtanh.pop %v1321
    %v1338 = vtanh.pop %v1322
    %v1339 = vtanh.pop %v1323
    %v1340 = vtanh.pop %v1324
    %v1341 = vtanh.pop %v1325
    %v1342 = vtanh.pop %v1326
    %v1343 = vtanh.pop %v1327
    %v1344 = vtanh.pop %v1328
    %v1345 = vtanh.pop %v1329
    %v1346 = vtanh.pop %v1330
    %v1347 = vtanh.pop %v1331
    %v1348 = vtanh.pop %v1332
    %v1349 = vtanh.pop %v1333
    %v1350 = vadd.f32 %v1334, 1.0
    %v1351 = vadd.f32 %v1335, 1.0
    %v1352 = vadd.f32 %v1336, 1.0
    %v1353 = vadd.f32 %v1337, 1.0
    %v1354 = vadd.f32 %v1338, 1.0
    %v1355 = vadd.f32 %v1339, 1.0
    %v1356 = vadd.f32 %v1340, 1.0
    %v1357 = vadd.f32 %v1341, 1.0
    %v1358 = vadd.f32 %v1342, 1.0
    %v1359 = vadd.f32 %v1343, 1.0
    %v1360 = vadd.f32 %v1344, 1.0
    %v1361 = vadd.f32 %v1345, 1.0
    %v1362 = vadd.f32 %v1346, 1.0
    %v1363 = vadd.f32 %v1347, 1.0
    %v1364 = vadd.f32 %v1348, 1.0
    %v1365 = vadd.f32 %v1349, 1.0
    %v1366 = vmul.f32 %v1350, 0.5
    %v1367 = vmul.f32 %v1351, 0.5
    %v1368 = vmul.f32 %v1352, 0.5
    %v1369 = vmul.f32 %v1353, 0.5
    %v1370 = vmul.f32 %v1354, 0.5
    %v1371 = vmul.f32 %v1355, 0.5
    %v1372 = vmul.f32 %v1356, 0.5
    %v1373 = vmul.f32 %v1357, 0.5
    %v1374 = vmul.f32 %v1358, 0.5
    %v1375 = vmul.f32 %v1359, 0.5
    %v1376 = vmul.f32 %v1360, 0.5
    %v1377 = vmul.f32 %v1361, 0.5
    %v1378 = vmul.f32 %v1362, 0.5
    %v1379 = vmul.f32 %v1363, 0.5
    %v1380 = vmul.f32 %v1364, 0.5
    %v1381 = vmul.f32 %v1365, 0.5
    %v1382 = vmul.f32 %v1192, %v1366
    %v1383 = vmul.f32 %v1195, %v1367
    %v1384 = vmul.f32 %v1200, %v1368
    %v1385 = vmul.f32 %v1203, %v1369
    %v1386 = vmul.f32 %v1208, %v1370
    %v1387 = vmul.f32 %v1211, %v1371
    %v1388 = vmul.f32 %v1216, %v1372
    %v1389 = vmul.f32 %v1219, %v1373
    %v1390 = vmul.f32 %v1224, %v1374
    %v1391 = vmul.f32 %v1227, %v1375
    %v1392 = vmul.f32 %v1232, %v1376
    %v1393 = vmul.f32 %v1235, %v1377
    %v1394 = vmul.f32 %v1240, %v1378
    %v1395 = vmul.f32 %v1243, %v1379
    %v1396 = vmul.f32 %v1248, %v1380
    %v1397 = vmul.f32 %v1251, %v1381
    %v1398 = vpack.c.bf16 %v1383, %v1382
    %v1399 = vpack.c.bf16 %v1385, %v1384
    %v1400 = vpack.c.bf16 %v1387, %v1386
    %v1401 = vpack.c.bf16 %v1389, %v1388
    %v1402 = vpack.c.bf16 %v1391, %v1390
    %v1403 = vpack.c.bf16 %v1393, %v1392
    %v1404 = vpack.c.bf16 %v1395, %v1394
    %v1405 = vpack.c.bf16 %v1397, %v1396
    %s1406 = scalar_lea.vmem [#allocation4], 128
    %v1407 = vld [vmem:[%s1406] sm:$0xf]
    %v1408 = vld [vmem:[%s1406 + $0x4] sm:$0xf]
    %v1409 = vld [vmem:[%s1406 + $0x8] sm:$0xf]
    %v1410 = vld [vmem:[%s1406 + $0xc] sm:$0xf]
    %v1411 = vld [vmem:[%s1406 + $0x10] sm:$0xf]
    %v1412 = vld [vmem:[%s1406 + $0x14] sm:$0xf]
    %v1413 = vld [vmem:[%s1406 + $0x18] sm:$0xf]
    %v1414 = vld [vmem:[%s1406 + $0x1c] sm:$0xf]
    %v1415 = vld [vmem:[%s1406 + $0x20] sm:$0xf]
    %v1416 = vld [vmem:[%s1406 + $0x24] sm:$0xf]
    %v1417 = vld [vmem:[%s1406 + $0x28] sm:$0xf]
    %v1418 = vld [vmem:[%s1406 + $0x2c] sm:$0xf]
    %v1419 = vld [vmem:[%s1406 + $0x30] sm:$0xf]
    %v1420 = vld [vmem:[%s1406 + $0x34] sm:$0xf]
    %v1421 = vld [vmem:[%s1406 + $0x38] sm:$0xf]
    %v1422 = vld [vmem:[%s1406 + $0x3c] sm:$0xf]
    %s1423 = scalar_lea.vmem %s4, 2
    %v1424 = vld [vmem:[%s1423] sm:$0x1]
    %v1426 = vlaneseq
    %v1427 = vshrl.u32 %v1426, 7
    %v1428 = vsub.s32 0, %v1427
    %v1429 = vrot.slane %v1424, %v1428
    %v1447 = vunpack.c.l.b16 %v1407
    %v1448 = vunpack.c.l.b16 %v1408
    %v1449 = vunpack.c.l.b16 %v1409
    %v1450 = vunpack.c.l.b16 %v1410
    %v1451 = vunpack.c.l.b16 %v1411
    %v1452 = vunpack.c.l.b16 %v1412
    %v1453 = vunpack.c.l.b16 %v1413
    %v1454 = vunpack.c.l.b16 %v1414
    %v1455 = vunpack.c.l.b16 %v1415
    %v1456 = vunpack.c.l.b16 %v1416
    %v1457 = vunpack.c.l.b16 %v1417
    %v1458 = vunpack.c.l.b16 %v1418
    %v1459 = vunpack.c.l.b16 %v1419
    %v1460 = vunpack.c.l.b16 %v1420
    %v1461 = vunpack.c.l.b16 %v1421
    %v1462 = vunpack.c.l.b16 %v1422
    %v1463 = vpack.c.b16 %v1448, %v1447
    %v1464 = vpack.c.b16 %v1450, %v1449
    %v1465 = vpack.c.b16 %v1452, %v1451
    %v1466 = vpack.c.b16 %v1454, %v1453
    %v1467 = vpack.c.b16 %v1456, %v1455
    %v1468 = vpack.c.b16 %v1458, %v1457
    %v1469 = vpack.c.b16 %v1460, %v1459
    %v1470 = vpack.c.b16 %v1462, %v1461
    %1479 = vmatprep.subr.bf16.mxu0 0
    %1480 = vmatpush1.bf16.msra.mxu0 %v1470
    %1481 = vmatprep.subr.bf16.mxu0 0
    %1482 = vmatpush1.bf16.msra.mxu0 %v1469
    %1483 = vmatprep.subr.bf16.mxu0 0
    %1484 = vmatpush1.bf16.msra.mxu0 %v1468
    %1485 = vmatprep.subr.bf16.mxu0 0
    %1486 = vmatpush1.bf16.msra.mxu0 %v1467
    %1487 = vmatprep.subr.bf16.mxu0 0
    %1488 = vmatpush1.bf16.msra.mxu0 %v1466
    %1489 = vmatprep.subr.bf16.mxu0 0
    %1490 = vmatpush1.bf16.msra.mxu0 %v1465
    %1491 = vmatprep.subr.bf16.mxu0 0
    %1492 = vmatpush1.bf16.msra.mxu0 %v1464
    %1493 = vmatprep.subr.bf16.mxu0 0
    %1494 = vmatpush1.bf16.msra.mxu0 %v1463
    %1495 = vmatprep.subr.bf16.mxu0 0
    %1496 = vmatpush2.bf16.msra.mxu0 0
    %1497 = vmatprep.subr.bf16.mxu0 0
    %1498 = vmatpush2.bf16.msra.mxu0 0
    %1499 = vmatprep.subr.bf16.mxu0 0
    %1500 = vmatpush2.bf16.msra.mxu0 0
    %1501 = vmatprep.subr.bf16.mxu0 0
    %1502 = vmatpush2.bf16.msra.mxu0 0
    %1503 = vmatprep.subr.bf16.mxu0 0
    %1504 = vmatpush2.bf16.msra.mxu0 0
    %1505 = vmatprep.subr.bf16.mxu0 0
    %1506 = vmatpush2.bf16.msra.mxu0 0
    %1507 = vmatprep.subr.bf16.mxu0 0
    %1508 = vmatpush2.bf16.msra.mxu0 0
    %1509 = vmatprep.subr.bf16.mxu0 0
    %1510 = vmatpush2.bf16.msra.mxu0 0
    %1511 = vmatprep.mubr.bf16.mxu0 0
    %1512 = vmatmul.mubr.bf16.gmra.mxu0 %v1398
    %v1513 = vpop.f32.mrf.mxu0
    %v1514 = vadd.f32 %v1429, %v1513
    %v1515 = vpop.f32.mrf.mxu0
    %v1516 = vpop.f32.mrf.mxu0
    %v1517 = vadd.f32 %v1429, %v1516
    %v1518 = vpop.f32.mrf.mxu0
    %1519 = vmatprep.mubr.bf16.mxu0 0
    %1520 = vmatmul.mubr.bf16.gmra.mxu0 %v1399
    %v1521 = vpop.f32.mrf.mxu0
    %v1522 = vadd.f32 %v1429, %v1521
    %v1523 = vpop.f32.mrf.mxu0
    %v1524 = vpop.f32.mrf.mxu0
    %v1525 = vadd.f32 %v1429, %v1524
    %v1526 = vpop.f32.mrf.mxu0
    %1527 = vmatprep.mubr.bf16.mxu0 0
    %1528 = vmatmul.mubr.bf16.gmra.mxu0 %v1400
    %v1529 = vpop.f32.mrf.mxu0
    %v1530 = vadd.f32 %v1429, %v1529
    %v1531 = vpop.f32.mrf.mxu0
    %v1532 = vpop.f32.mrf.mxu0
    %v1533 = vadd.f32 %v1429, %v1532
    %v1534 = vpop.f32.mrf.mxu0
    %1535 = vmatprep.mubr.bf16.mxu0 0
    %1536 = vmatmul.mubr.bf16.gmra.mxu0 %v1401
    %v1537 = vpop.f32.mrf.mxu0
    %v1538 = vadd.f32 %v1429, %v1537
    %v1539 = vpop.f32.mrf.mxu0
    %v1540 = vpop.f32.mrf.mxu0
    %v1541 = vadd.f32 %v1429, %v1540
    %v1542 = vpop.f32.mrf.mxu0
    %1543 = vmatprep.mubr.bf16.mxu0 0
    %1544 = vmatmul.mubr.bf16.gmra.mxu0 %v1402
    %v1545 = vpop.f32.mrf.mxu0
    %v1546 = vadd.f32 %v1429, %v1545
    %v1547 = vpop.f32.mrf.mxu0
    %v1548 = vpop.f32.mrf.mxu0
    %v1549 = vadd.f32 %v1429, %v1548
    %v1550 = vpop.f32.mrf.mxu0
    %1551 = vmatprep.mubr.bf16.mxu0 0
    %1552 = vmatmul.mubr.bf16.gmra.mxu0 %v1403
    %v1553 = vpop.f32.mrf.mxu0
    %v1554 = vadd.f32 %v1429, %v1553
    %v1555 = vpop.f32.mrf.mxu0
    %v1556 = vpop.f32.mrf.mxu0
    %v1557 = vadd.f32 %v1429, %v1556
    %v1558 = vpop.f32.mrf.mxu0
    %1559 = vmatprep.mubr.bf16.mxu0 0
    %1560 = vmatmul.mubr.bf16.gmra.mxu0 %v1404
    %v1561 = vpop.f32.mrf.mxu0
    %v1562 = vadd.f32 %v1429, %v1561
    %v1563 = vpop.f32.mrf.mxu0
    %v1564 = vpop.f32.mrf.mxu0
    %v1565 = vadd.f32 %v1429, %v1564
    %v1566 = vpop.f32.mrf.mxu0
    %1567 = vmatprep.mubr.bf16.mxu0 0
    %1568 = vmatmul.mubr.bf16.gmra.mxu0 %v1405
    %v1569 = vpop.f32.mrf.mxu0
    %v1570 = vadd.f32 %v1429, %v1569
    %v1571 = vpop.f32.mrf.mxu0
    %v1572 = vpop.f32.mrf.mxu0
    %v1573 = vadd.f32 %v1429, %v1572
    %v1574 = vpop.f32.mrf.mxu0
    %1575 = vdwg.mxu0
    %v1576 = vpack.c.bf16 %v1517, %v1514
    %v1577 = vpack.c.bf16 %v1525, %v1522
    %v1578 = vpack.c.bf16 %v1533, %v1530
    %v1579 = vpack.c.bf16 %v1541, %v1538
    %v1580 = vpack.c.bf16 %v1549, %v1546
    %v1581 = vpack.c.bf16 %v1557, %v1554
    %v1582 = vpack.c.bf16 %v1565, %v1562
    %v1583 = vpack.c.bf16 %v1573, %v1570
    %s1584 = scalar_lea.vmem [#allocation2], 192
    %v1585 = vld [vmem:[%s1584] sm:$0xf]
    %v1586 = vld [vmem:[%s1584 + $0x4] sm:$0xf]
    %v1587 = vld [vmem:[%s1584 + $0x8] sm:$0xf]
    %v1588 = vld [vmem:[%s1584 + $0xc] sm:$0xf]
    %v1589 = vld [vmem:[%s1584 + $0x10] sm:$0xf]
    %v1590 = vld [vmem:[%s1584 + $0x14] sm:$0xf]
    %v1591 = vld [vmem:[%s1584 + $0x18] sm:$0xf]
    %v1592 = vld [vmem:[%s1584 + $0x1c] sm:$0xf]
    %v1593 = vld [vmem:[%s1584 + $0x20] sm:$0xf]
    %v1594 = vld [vmem:[%s1584 + $0x24] sm:$0xf]
    %v1595 = vld [vmem:[%s1584 + $0x28] sm:$0xf]
    %v1596 = vld [vmem:[%s1584 + $0x2c] sm:$0xf]
    %v1597 = vld [vmem:[%s1584 + $0x30] sm:$0xf]
    %v1598 = vld [vmem:[%s1584 + $0x34] sm:$0xf]
    %v1599 = vld [vmem:[%s1584 + $0x38] sm:$0xf]
    %v1600 = vld [vmem:[%s1584 + $0x3c] sm:$0xf]
    %s1601 = scalar_lea.vmem %s2, 3
    %v1602 = vld [vmem:[%s1601] sm:$0x1]
    %v1604 = vlaneseq
    %v1605 = vshrl.u32 %v1604, 7
    %v1606 = vsub.s32 0, %v1605
    %v1607 = vrot.slane %v1602, %v1606
    %v1625 = vunpack.c.l.b16 %v1585
    %v1626 = vunpack.c.l.b16 %v1586
    %v1627 = vunpack.c.l.b16 %v1587
    %v1628 = vunpack.c.l.b16 %v1588
    %v1629 = vunpack.c.l.b16 %v1589
    %v1630 = vunpack.c.l.b16 %v1590
    %v1631 = vunpack.c.l.b16 %v1591
    %v1632 = vunpack.c.l.b16 %v1592
    %v1633 = vunpack.c.l.b16 %v1593
    %v1634 = vunpack.c.l.b16 %v1594
    %v1635 = vunpack.c.l.b16 %v1595
    %v1636 = vunpack.c.l.b16 %v1596
    %v1637 = vunpack.c.l.b16 %v1597
    %v1638 = vunpack.c.l.b16 %v1598
    %v1639 = vunpack.c.l.b16 %v1599
    %v1640 = vunpack.c.l.b16 %v1600
    %v1641 = vpack.c.b16 %v1626, %v1625
    %v1642 = vpack.c.b16 %v1628, %v1627
    %v1643 = vpack.c.b16 %v1630, %v1629
    %v1644 = vpack.c.b16 %v1632, %v1631
    %v1645 = vpack.c.b16 %v1634, %v1633
    %v1646 = vpack.c.b16 %v1636, %v1635
    %v1647 = vpack.c.b16 %v1638, %v1637
    %v1648 = vpack.c.b16 %v1640, %v1639
    %1657 = vmatprep.subr.bf16.mxu0 0
    %1658 = vmatpush1.bf16.msra.mxu0 %v1648
    %1659 = vmatprep.subr.bf16.mxu0 0
    %1660 = vmatpush1.bf16.msra.mxu0 %v1647
    %1661 = vmatprep.subr.bf16.mxu0 0
    %1662 = vmatpush1.bf16.msra.mxu0 %v1646
    %1663 = vmatprep.subr.bf16.mxu0 0
    %1664 = vmatpush1.bf16.msra.mxu0 %v1645
    %1665 = vmatprep.subr.bf16.mxu0 0
    %1666 = vmatpush1.bf16.msra.mxu0 %v1644
    %1667 = vmatprep.subr.bf16.mxu0 0
    %1668 = vmatpush1.bf16.msra.mxu0 %v1643
    %1669 = vmatprep.subr.bf16.mxu0 0
    %1670 = vmatpush1.bf16.msra.mxu0 %v1642
    %1671 = vmatprep.subr.bf16.mxu0 0
    %1672 = vmatpush1.bf16.msra.mxu0 %v1641
    %1673 = vmatprep.subr.bf16.mxu0 0
    %1674 = vmatpush2.bf16.msra.mxu0 0
    %1675 = vmatprep.subr.bf16.mxu0 0
    %1676 = vmatpush2.bf16.msra.mxu0 0
    %1677 = vmatprep.subr.bf16.mxu0 0
    %1678 = vmatpush2.bf16.msra.mxu0 0
    %1679 = vmatprep.subr.bf16.mxu0 0
    %1680 = vmatpush2.bf16.msra.mxu0 0
    %1681 = vmatprep.subr.bf16.mxu0 0
    %1682 = vmatpush2.bf16.msra.mxu0 0
    %1683 = vmatprep.subr.bf16.mxu0 0
    %1684 = vmatpush2.bf16.msra.mxu0 0
    %1685 = vmatprep.subr.bf16.mxu0 0
    %1686 = vmatpush2.bf16.msra.mxu0 0
    %1687 = vmatprep.subr.bf16.mxu0 0
    %1688 = vmatpush2.bf16.msra.mxu0 0
    %1689 = vmatprep.mubr.bf16.mxu0 0
    %1690 = vmatmul.mubr.bf16.gmra.mxu0 %v1576
    %v1691 = vpop.f32.mrf.mxu0
    %v1692 = vadd.f32 %v1607, %v1691
    %v1693 = vpop.f32.mrf.mxu0
    %v1694 = vpop.f32.mrf.mxu0
    %v1695 = vadd.f32 %v1607, %v1694
    %v1696 = vpop.f32.mrf.mxu0
    %1697 = vmatprep.mubr.bf16.mxu0 0
    %1698 = vmatmul.mubr.bf16.gmra.mxu0 %v1577
    %v1699 = vpop.f32.mrf.mxu0
    %v1700 = vadd.f32 %v1607, %v1699
    %v1701 = vpop.f32.mrf.mxu0
    %v1702 = vpop.f32.mrf.mxu0
    %v1703 = vadd.f32 %v1607, %v1702
    %v1704 = vpop.f32.mrf.mxu0
    %1705 = vmatprep.mubr.bf16.mxu0 0
    %1706 = vmatmul.mubr.bf16.gmra.mxu0 %v1578
    %v1707 = vpop.f32.mrf.mxu0
    %v1708 = vadd.f32 %v1607, %v1707
    %v1709 = vpop.f32.mrf.mxu0
    %v1710 = vpop.f32.mrf.mxu0
    %v1711 = vadd.f32 %v1607, %v1710
    %v1712 = vpop.f32.mrf.mxu0
    %1713 = vmatprep.mubr.bf16.mxu0 0
    %1714 = vmatmul.mubr.bf16.gmra.mxu0 %v1579
    %v1715 = vpop.f32.mrf.mxu0
    %v1716 = vadd.f32 %v1607, %v1715
    %v1717 = vpop.f32.mrf.mxu0
    %v1718 = vpop.f32.mrf.mxu0
    %v1719 = vadd.f32 %v1607, %v1718
    %v1720 = vpop.f32.mrf.mxu0
    %1721 = vmatprep.mubr.bf16.mxu0 0
    %1722 = vmatmul.mubr.bf16.gmra.mxu0 %v1580
    %v1723 = vpop.f32.mrf.mxu0
    %v1724 = vadd.f32 %v1607, %v1723
    %v1725 = vpop.f32.mrf.mxu0
    %v1726 = vpop.f32.mrf.mxu0
    %v1727 = vadd.f32 %v1607, %v1726
    %v1728 = vpop.f32.mrf.mxu0
    %1729 = vmatprep.mubr.bf16.mxu0 0
    %1730 = vmatmul.mubr.bf16.gmra.mxu0 %v1581
    %v1731 = vpop.f32.mrf.mxu0
    %v1732 = vadd.f32 %v1607, %v1731
    %v1733 = vpop.f32.mrf.mxu0
    %v1734 = vpop.f32.mrf.mxu0
    %v1735 = vadd.f32 %v1607, %v1734
    %v1736 = vpop.f32.mrf.mxu0
    %1737 = vmatprep.mubr.bf16.mxu0 0
    %1738 = vmatmul.mubr.bf16.gmra.mxu0 %v1582
    %v1739 = vpop.f32.mrf.mxu0
    %v1740 = vadd.f32 %v1607, %v1739
    %v1741 = vpop.f32.mrf.mxu0
    %v1742 = vpop.f32.mrf.mxu0
    %v1743 = vadd.f32 %v1607, %v1742
    %v1744 = vpop.f32.mrf.mxu0
    %1745 = vmatprep.mubr.bf16.mxu0 0
    %1746 = vmatmul.mubr.bf16.gmra.mxu0 %v1583
    %v1747 = vpop.f32.mrf.mxu0
    %v1748 = vadd.f32 %v1607, %v1747
    %v1749 = vpop.f32.mrf.mxu0
    %v1750 = vpop.f32.mrf.mxu0
    %v1751 = vadd.f32 %v1607, %v1750
    %v1752 = vpop.f32.mrf.mxu0
    %1753 = vdwg.mxu0
    %v1754 = vmul.f32 %v1692, %v1692
    %v1755 = vmul.f32 %v1695, %v1695
    %v1756 = vmul.f32 %v1700, %v1700
    %v1757 = vmul.f32 %v1703, %v1703
    %v1758 = vmul.f32 %v1708, %v1708
    %v1759 = vmul.f32 %v1711, %v1711
    %v1760 = vmul.f32 %v1716, %v1716
    %v1761 = vmul.f32 %v1719, %v1719
    %v1762 = vmul.f32 %v1724, %v1724
    %v1763 = vmul.f32 %v1727, %v1727
    %v1764 = vmul.f32 %v1732, %v1732
    %v1765 = vmul.f32 %v1735, %v1735
    %v1766 = vmul.f32 %v1740, %v1740
    %v1767 = vmul.f32 %v1743, %v1743
    %v1768 = vmul.f32 %v1748, %v1748
    %v1769 = vmul.f32 %v1751, %v1751
    %v1770 = vmul.f32 %v1692, %v1754
    %v1771 = vmul.f32 %v1695, %v1755
    %v1772 = vmul.f32 %v1700, %v1756
    %v1773 = vmul.f32 %v1703, %v1757
    %v1774 = vmul.f32 %v1708, %v1758
    %v1775 = vmul.f32 %v1711, %v1759
    %v1776 = vmul.f32 %v1716, %v1760
    %v1777 = vmul.f32 %v1719, %v1761
    %v1778 = vmul.f32 %v1724, %v1762
    %v1779 = vmul.f32 %v1727, %v1763
    %v1780 = vmul.f32 %v1732, %v1764
    %v1781 = vmul.f32 %v1735, %v1765
    %v1782 = vmul.f32 %v1740, %v1766
    %v1783 = vmul.f32 %v1743, %v1767
    %v1784 = vmul.f32 %v1748, %v1768
    %v1785 = vmul.f32 %v1751, %v1769
    %v1786 = vmul.f32 %v1770, 0.044715
    %v1787 = vmul.f32 %v1771, 0.044715
    %v1788 = vmul.f32 %v1772, 0.044715
    %v1789 = vmul.f32 %v1773, 0.044715
    %v1790 = vmul.f32 %v1774, 0.044715
    %v1791 = vmul.f32 %v1775, 0.044715
    %v1792 = vmul.f32 %v1776, 0.044715
    %v1793 = vmul.f32 %v1777, 0.044715
    %v1794 = vmul.f32 %v1778, 0.044715
    %v1795 = vmul.f32 %v1779, 0.044715
    %v1796 = vmul.f32 %v1780, 0.044715
    %v1797 = vmul.f32 %v1781, 0.044715
    %v1798 = vmul.f32 %v1782, 0.044715
    %v1799 = vmul.f32 %v1783, 0.044715
    %v1800 = vmul.f32 %v1784, 0.044715
    %v1801 = vmul.f32 %v1785, 0.044715
    %v1802 = vadd.f32 %v1692, %v1786
    %v1803 = vadd.f32 %v1695, %v1787
    %v1804 = vadd.f32 %v1700, %v1788
    %v1805 = vadd.f32 %v1703, %v1789
    %v1806 = vadd.f32 %v1708, %v1790
    %v1807 = vadd.f32 %v1711, %v1791
    %v1808 = vadd.f32 %v1716, %v1792
    %v1809 = vadd.f32 %v1719, %v1793
    %v1810 = vadd.f32 %v1724, %v1794
    %v1811 = vadd.f32 %v1727, %v1795
    %v1812 = vadd.f32 %v1732, %v1796
    %v1813 = vadd.f32 %v1735, %v1797
    %v1814 = vadd.f32 %v1740, %v1798
    %v1815 = vadd.f32 %v1743, %v1799
    %v1816 = vadd.f32 %v1748, %v1800
    %v1817 = vadd.f32 %v1751, %v1801
    %v1818 = vmul.f32 %v1802, 0.7978846
    %v1819 = vmul.f32 %v1803, 0.7978846
    %v1820 = vmul.f32 %v1804, 0.7978846
    %v1821 = vmul.f32 %v1805, 0.7978846
    %v1822 = vmul.f32 %v1806, 0.7978846
    %v1823 = vmul.f32 %v1807, 0.7978846
    %v1824 = vmul.f32 %v1808, 0.7978846
    %v1825 = vmul.f32 %v1809, 0.7978846
    %v1826 = vmul.f32 %v1810, 0.7978846
    %v1827 = vmul.f32 %v1811, 0.7978846
    %v1828 = vmul.f32 %v1812, 0.7978846
    %v1829 = vmul.f32 %v1813, 0.7978846
    %v1830 = vmul.f32 %v1814, 0.7978846
    %v1831 = vmul.f32 %v1815, 0.7978846
    %v1832 = vmul.f32 %v1816, 0.7978846
    %v1833 = vmul.f32 %v1817, 0.7978846
    %v1834 = vtanh.pop %v1818
    %v1835 = vtanh.pop %v1819
    %v1836 = vtanh.pop %v1820
    %v1837 = vtanh.pop %v1821
    %v1838 = vtanh.pop %v1822
    %v1839 = vtanh.pop %v1823
    %v1840 = vtanh.pop %v1824
    %v1841 = vtanh.pop %v1825
    %v1842 = vtanh.pop %v1826
    %v1843 = vtanh.pop %v1827
    %v1844 = vtanh.pop %v1828
    %v1845 = vtanh.pop %v1829
    %v1846 = vtanh.pop %v1830
    %v1847 = vtanh.pop %v1831
    %v1848 = vtanh.pop %v1832
    %v1849 = vtanh.pop %v1833
    %v1850 = vadd.f32 %v1834, 1.0
    %v1851 = vadd.f32 %v1835, 1.0
    %v1852 = vadd.f32 %v1836, 1.0
    %v1853 = vadd.f32 %v1837, 1.0
    %v1854 = vadd.f32 %v1838, 1.0
    %v1855 = vadd.f32 %v1839, 1.0
    %v1856 = vadd.f32 %v1840, 1.0
    %v1857 = vadd.f32 %v1841, 1.0
    %v1858 = vadd.f32 %v1842, 1.0
    %v1859 = vadd.f32 %v1843, 1.0
    %v1860 = vadd.f32 %v1844, 1.0
    %v1861 = vadd.f32 %v1845, 1.0
    %v1862 = vadd.f32 %v1846, 1.0
    %v1863 = vadd.f32 %v1847, 1.0
    %v1864 = vadd.f32 %v1848, 1.0
    %v1865 = vadd.f32 %v1849, 1.0
    %v1866 = vmul.f32 %v1850, 0.5
    %v1867 = vmul.f32 %v1851, 0.5
    %v1868 = vmul.f32 %v1852, 0.5
    %v1869 = vmul.f32 %v1853, 0.5
    %v1870 = vmul.f32 %v1854, 0.5
    %v1871 = vmul.f32 %v1855, 0.5
    %v1872 = vmul.f32 %v1856, 0.5
    %v1873 = vmul.f32 %v1857, 0.5
    %v1874 = vmul.f32 %v1858, 0.5
    %v1875 = vmul.f32 %v1859, 0.5
    %v1876 = vmul.f32 %v1860, 0.5
    %v1877 = vmul.f32 %v1861, 0.5
    %v1878 = vmul.f32 %v1862, 0.5
    %v1879 = vmul.f32 %v1863, 0.5
    %v1880 = vmul.f32 %v1864, 0.5
    %v1881 = vmul.f32 %v1865, 0.5
    %v1882 = vmul.f32 %v1692, %v1866
    %v1883 = vmul.f32 %v1695, %v1867
    %v1884 = vmul.f32 %v1700, %v1868
    %v1885 = vmul.f32 %v1703, %v1869
    %v1886 = vmul.f32 %v1708, %v1870
    %v1887 = vmul.f32 %v1711, %v1871
    %v1888 = vmul.f32 %v1716, %v1872
    %v1889 = vmul.f32 %v1719, %v1873
    %v1890 = vmul.f32 %v1724, %v1874
    %v1891 = vmul.f32 %v1727, %v1875
    %v1892 = vmul.f32 %v1732, %v1876
    %v1893 = vmul.f32 %v1735, %v1877
    %v1894 = vmul.f32 %v1740, %v1878
    %v1895 = vmul.f32 %v1743, %v1879
    %v1896 = vmul.f32 %v1748, %v1880
    %v1897 = vmul.f32 %v1751, %v1881
    %v1898 = vpack.c.bf16 %v1883, %v1882
    %v1899 = vpack.c.bf16 %v1885, %v1884
    %v1900 = vpack.c.bf16 %v1887, %v1886
    %v1901 = vpack.c.bf16 %v1889, %v1888
    %v1902 = vpack.c.bf16 %v1891, %v1890
    %v1903 = vpack.c.bf16 %v1893, %v1892
    %v1904 = vpack.c.bf16 %v1895, %v1894
    %v1905 = vpack.c.bf16 %v1897, %v1896
    %s1906 = scalar_lea.vmem [#allocation4], 192
    %v1907 = vld [vmem:[%s1906] sm:$0xf]
    %v1908 = vld [vmem:[%s1906 + $0x4] sm:$0xf]
    %v1909 = vld [vmem:[%s1906 + $0x8] sm:$0xf]
    %v1910 = vld [vmem:[%s1906 + $0xc] sm:$0xf]
    %v1911 = vld [vmem:[%s1906 + $0x10] sm:$0xf]
    %v1912 = vld [vmem:[%s1906 + $0x14] sm:$0xf]
    %v1913 = vld [vmem:[%s1906 + $0x18] sm:$0xf]
    %v1914 = vld [vmem:[%s1906 + $0x1c] sm:$0xf]
    %v1915 = vld [vmem:[%s1906 + $0x20] sm:$0xf]
    %v1916 = vld [vmem:[%s1906 + $0x24] sm:$0xf]
    %v1917 = vld [vmem:[%s1906 + $0x28] sm:$0xf]
    %v1918 = vld [vmem:[%s1906 + $0x2c] sm:$0xf]
    %v1919 = vld [vmem:[%s1906 + $0x30] sm:$0xf]
    %v1920 = vld [vmem:[%s1906 + $0x34] sm:$0xf]
    %v1921 = vld [vmem:[%s1906 + $0x38] sm:$0xf]
    %v1922 = vld [vmem:[%s1906 + $0x3c] sm:$0xf]
    %s1923 = scalar_lea.vmem %s4, 3
    %v1924 = vld [vmem:[%s1923] sm:$0x1]
    %v1926 = vlaneseq
    %v1927 = vshrl.u32 %v1926, 7
    %v1928 = vsub.s32 0, %v1927
    %v1929 = vrot.slane %v1924, %v1928
    %v1947 = vunpack.c.l.b16 %v1907
    %v1948 = vunpack.c.l.b16 %v1908
    %v1949 = vunpack.c.l.b16 %v1909
    %v1950 = vunpack.c.l.b16 %v1910
    %v1951 = vunpack.c.l.b16 %v1911
    %v1952 = vunpack.c.l.b16 %v1912
    %v1953 = vunpack.c.l.b16 %v1913
    %v1954 = vunpack.c.l.b16 %v1914
    %v1955 = vunpack.c.l.b16 %v1915
    %v1956 = vunpack.c.l.b16 %v1916
    %v1957 = vunpack.c.l.b16 %v1917
    %v1958 = vunpack.c.l.b16 %v1918
    %v1959 = vunpack.c.l.b16 %v1919
    %v1960 = vunpack.c.l.b16 %v1920
    %v1961 = vunpack.c.l.b16 %v1921
    %v1962 = vunpack.c.l.b16 %v1922
    %v1963 = vpack.c.b16 %v1948, %v1947
    %v1964 = vpack.c.b16 %v1950, %v1949
    %v1965 = vpack.c.b16 %v1952, %v1951
    %v1966 = vpack.c.b16 %v1954, %v1953
    %v1967 = vpack.c.b16 %v1956, %v1955
    %v1968 = vpack.c.b16 %v1958, %v1957
    %v1969 = vpack.c.b16 %v1960, %v1959
    %v1970 = vpack.c.b16 %v1962, %v1961
    %1979 = vmatprep.subr.bf16.mxu0 0
    %1980 = vmatpush1.bf16.msra.mxu0 %v1970
    %1981 = vmatprep.subr.bf16.mxu0 0
    %1982 = vmatpush1.bf16.msra.mxu0 %v1969
    %1983 = vmatprep.subr.bf16.mxu0 0
    %1984 = vmatpush1.bf16.msra.mxu0 %v1968
    %1985 = vmatprep.subr.bf16.mxu0 0
    %1986 = vmatpush1.bf16.msra.mxu0 %v1967
    %1987 = vmatprep.subr.bf16.mxu0 0
    %1988 = vmatpush1.bf16.msra.mxu0 %v1966
    %1989 = vmatprep.subr.bf16.mxu0 0
    %1990 = vmatpush1.bf16.msra.mxu0 %v1965
    %1991 = vmatprep.subr.bf16.mxu0 0
    %1992 = vmatpush1.bf16.msra.mxu0 %v1964
    %1993 = vmatprep.subr.bf16.mxu0 0
    %1994 = vmatpush1.bf16.msra.mxu0 %v1963
    %1995 = vmatprep.subr.bf16.mxu0 0
    %1996 = vmatpush2.bf16.msra.mxu0 0
    %1997 = vmatprep.subr.bf16.mxu0 0
    %1998 = vmatpush2.bf16.msra.mxu0 0
    %1999 = vmatprep.subr.bf16.mxu0 0
    %2000 = vmatpush2.bf16.msra.mxu0 0
    %2001 = vmatprep.subr.bf16.mxu0 0
    %2002 = vmatpush2.bf16.msra.mxu0 0
    %2003 = vmatprep.subr.bf16.mxu0 0
    %2004 = vmatpush2.bf16.msra.mxu0 0
    %2005 = vmatprep.subr.bf16.mxu0 0
    %2006 = vmatpush2.bf16.msra.mxu0 0
    %2007 = vmatprep.subr.bf16.mxu0 0
    %2008 = vmatpush2.bf16.msra.mxu0 0
    %2009 = vmatprep.subr.bf16.mxu0 0
    %2010 = vmatpush2.bf16.msra.mxu0 0
    %2011 = vmatprep.mubr.bf16.mxu0 0
    %2012 = vmatmul.mubr.bf16.gmra.mxu0 %v1898
    %v2013 = vpop.f32.mrf.mxu0
    %v2014 = vadd.f32 %v1929, %v2013
    %v2015 = vpop.f32.mrf.mxu0
    %v2016 = vpop.f32.mrf.mxu0
    %v2017 = vadd.f32 %v1929, %v2016
    %v2018 = vpop.f32.mrf.mxu0
    %2019 = vmatprep.mubr.bf16.mxu0 0
    %2020 = vmatmul.mubr.bf16.gmra.mxu0 %v1899
    %v2021 = vpop.f32.mrf.mxu0
    %v2022 = vadd.f32 %v1929, %v2021
    %v2023 = vpop.f32.mrf.mxu0
    %v2024 = vpop.f32.mrf.mxu0
    %v2025 = vadd.f32 %v1929, %v2024
    %v2026 = vpop.f32.mrf.mxu0
    %2027 = vmatprep.mubr.bf16.mxu0 0
    %2028 = vmatmul.mubr.bf16.gmra.mxu0 %v1900
    %v2029 = vpop.f32.mrf.mxu0
    %v2030 = vadd.f32 %v1929, %v2029
    %v2031 = vpop.f32.mrf.mxu0
    %v2032 = vpop.f32.mrf.mxu0
    %v2033 = vadd.f32 %v1929, %v2032
    %v2034 = vpop.f32.mrf.mxu0
    %2035 = vmatprep.mubr.bf16.mxu0 0
    %2036 = vmatmul.mubr.bf16.gmra.mxu0 %v1901
    %v2037 = vpop.f32.mrf.mxu0
    %v2038 = vadd.f32 %v1929, %v2037
    %v2039 = vpop.f32.mrf.mxu0
    %v2040 = vpop.f32.mrf.mxu0
    %v2041 = vadd.f32 %v1929, %v2040
    %v2042 = vpop.f32.mrf.mxu0
    %2043 = vmatprep.mubr.bf16.mxu0 0
    %2044 = vmatmul.mubr.bf16.gmra.mxu0 %v1902
    %v2045 = vpop.f32.mrf.mxu0
    %v2046 = vadd.f32 %v1929, %v2045
    %v2047 = vpop.f32.mrf.mxu0
    %v2048 = vpop.f32.mrf.mxu0
    %v2049 = vadd.f32 %v1929, %v2048
    %v2050 = vpop.f32.mrf.mxu0
    %2051 = vmatprep.mubr.bf16.mxu0 0
    %2052 = vmatmul.mubr.bf16.gmra.mxu0 %v1903
    %v2053 = vpop.f32.mrf.mxu0
    %v2054 = vadd.f32 %v1929, %v2053
    %v2055 = vpop.f32.mrf.mxu0
    %v2056 = vpop.f32.mrf.mxu0
    %v2057 = vadd.f32 %v1929, %v2056
    %v2058 = vpop.f32.mrf.mxu0
    %2059 = vmatprep.mubr.bf16.mxu0 0
    %2060 = vmatmul.mubr.bf16.gmra.mxu0 %v1904
    %v2061 = vpop.f32.mrf.mxu0
    %v2062 = vadd.f32 %v1929, %v2061
    %v2063 = vpop.f32.mrf.mxu0
    %v2064 = vpop.f32.mrf.mxu0
    %v2065 = vadd.f32 %v1929, %v2064
    %v2066 = vpop.f32.mrf.mxu0
    %2067 = vmatprep.mubr.bf16.mxu0 0
    %2068 = vmatmul.mubr.bf16.gmra.mxu0 %v1905
    %v2069 = vpop.f32.mrf.mxu0
    %v2070 = vadd.f32 %v1929, %v2069
    %v2071 = vpop.f32.mrf.mxu0
    %v2072 = vpop.f32.mrf.mxu0
    %v2073 = vadd.f32 %v1929, %v2072
    %v2074 = vpop.f32.mrf.mxu0
    %2075 = vdwg.mxu0
    %2076 = vadd.xlane.f32.xlu0 %v2014
    %v2077 = vpop.xlane.xlu0 %2076
    %2078 = vadd.xlane.f32.xlu0 %v2017
    %v2079 = vpop.xlane.xlu0 %2078
    %2080 = vadd.xlane.f32.xlu0 %v2022
    %v2081 = vpop.xlane.xlu0 %2080
    %2082 = vadd.xlane.f32.xlu0 %v2025
    %v2083 = vpop.xlane.xlu0 %2082
    %2084 = vadd.xlane.f32.xlu0 %v2030
    %v2085 = vpop.xlane.xlu0 %2084
    %2086 = vadd.xlane.f32.xlu0 %v2033
    %v2087 = vpop.xlane.xlu0 %2086
    %2088 = vadd.xlane.f32.xlu0 %v2038
    %v2089 = vpop.xlane.xlu0 %2088
    %2090 = vadd.xlane.f32.xlu0 %v2041
    %v2091 = vpop.xlane.xlu0 %2090
    %2092 = vadd.xlane.f32.xlu0 %v2046
    %v2093 = vpop.xlane.xlu0 %2092
    %2094 = vadd.xlane.f32.xlu0 %v2049
    %v2095 = vpop.xlane.xlu0 %2094
    %2096 = vadd.xlane.f32.xlu0 %v2054
    %v2097 = vpop.xlane.xlu0 %2096
    %2098 = vadd.xlane.f32.xlu0 %v2057
    %v2099 = vpop.xlane.xlu0 %2098
    %2100 = vadd.xlane.f32.xlu0 %v2062
    %v2101 = vpop.xlane.xlu0 %2100
    %2102 = vadd.xlane.f32.xlu0 %v2065
    %v2103 = vpop.xlane.xlu0 %2102
    %2104 = vadd.xlane.f32.xlu0 %v2070
    %v2105 = vpop.xlane.xlu0 %2104
    %2106 = vadd.xlane.f32.xlu0 %v2073
    %v2107 = vpop.xlane.xlu0 %2106
    %v2108 = vrcp.pop 128.0
    %v2109 = vmul.f32 %v2077, %v2108
    %v2110 = vmul.f32 %v2079, %v2108
    %v2111 = vmul.f32 %v2081, %v2108
    %v2112 = vmul.f32 %v2083, %v2108
    %v2113 = vmul.f32 %v2085, %v2108
    %v2114 = vmul.f32 %v2087, %v2108
    %v2115 = vmul.f32 %v2089, %v2108
    %v2116 = vmul.f32 %v2091, %v2108
    %v2117 = vmul.f32 %v2093, %v2108
    %v2118 = vmul.f32 %v2095, %v2108
    %v2119 = vmul.f32 %v2097, %v2108
    %v2120 = vmul.f32 %v2099, %v2108
    %v2121 = vmul.f32 %v2101, %v2108
    %v2122 = vmul.f32 %v2103, %v2108
    %v2123 = vmul.f32 %v2105, %v2108
    %v2124 = vmul.f32 %v2107, %v2108
    %v2125 = vsub.f32 %v2014, %v2109
    %v2126 = vsub.f32 %v2017, %v2110
    %v2127 = vsub.f32 %v2022, %v2111
    %v2128 = vsub.f32 %v2025, %v2112
    %v2129 = vsub.f32 %v2030, %v2113
    %v2130 = vsub.f32 %v2033, %v2114
    %v2131 = vsub.f32 %v2038, %v2115
    %v2132 = vsub.f32 %v2041, %v2116
    %v2133 = vsub.f32 %v2046, %v2117
    %v2134 = vsub.f32 %v2049, %v2118
    %v2135 = vsub.f32 %v2054, %v2119
    %v2136 = vsub.f32 %v2057, %v2120
    %v2137 = vsub.f32 %v2062, %v2121
    %v2138 = vsub.f32 %v2065, %v2122
    %v2139 = vsub.f32 %v2070, %v2123
    %v2140 = vsub.f32 %v2073, %v2124
    %v2141 = vmul.f32 %v2125, %v2125
    %v2142 = vmul.f32 %v2126, %v2126
    %v2143 = vmul.f32 %v2127, %v2127
    %v2144 = vmul.f32 %v2128, %v2128
    %v2145 = vmul.f32 %v2129, %v2129
    %v2146 = vmul.f32 %v2130, %v2130
    %v2147 = vmul.f32 %v2131, %v2131
    %v2148 = vmul.f32 %v2132, %v2132
    %v2149 = vmul.f32 %v2133, %v2133
    %v2150 = vmul.f32 %v2134, %v2134
    %v2151 = vmul.f32 %v2135, %v2135
    %v2152 = vmul.f32 %v2136, %v2136
    %v2153 = vmul.f32 %v2137, %v2137
    %v2154 = vmul.f32 %v2138, %v2138
    %v2155 = vmul.f32 %v2139, %v2139
    %v2156 = vmul.f32 %v2140, %v2140
    %2157 = vadd.xlane.f32.xlu0 %v2141
    %v2158 = vpop.xlane.xlu0 %2157
    %2159 = vadd.xlane.f32.xlu0 %v2142
    %v2160 = vpop.xlane.xlu0 %2159
    %2161 = vadd.xlane.f32.xlu0 %v2143
    %v2162 = vpop.xlane.xlu0 %2161
    %2163 = vadd.xlane.f32.xlu0 %v2144
    %v2164 = vpop.xlane.xlu0 %2163
    %2165 = vadd.xlane.f32.xlu0 %v2145
    %v2166 = vpop.xlane.xlu0 %2165
    %2167 = vadd.xlane.f32.xlu0 %v2146
    %v2168 = vpop.xlane.xlu0 %2167
    %2169 = vadd.xlane.f32.xlu0 %v2147
    %v2170 = vpop.xlane.xlu0 %2169
    %2171 = vadd.xlane.f32.xlu0 %v2148
    %v2172 = vpop.xlane.xlu0 %2171
    %2173 = vadd.xlane.f32.xlu0 %v2149
    %v2174 = vpop.xlane.xlu0 %2173
    %2175 = vadd.xlane.f32.xlu0 %v2150
    %v2176 = vpop.xlane.xlu0 %2175
    %2177 = vadd.xlane.f32.xlu0 %v2151
    %v2178 = vpop.xlane.xlu0 %2177
    %2179 = vadd.xlane.f32.xlu0 %v2152
    %v2180 = vpop.xlane.xlu0 %2179
    %2181 = vadd.xlane.f32.xlu0 %v2153
    %v2182 = vpop.xlane.xlu0 %2181
    %2183 = vadd.xlane.f32.xlu0 %v2154
    %v2184 = vpop.xlane.xlu0 %2183
    %2185 = vadd.xlane.f32.xlu0 %v2155
    %v2186 = vpop.xlane.xlu0 %2185
    %2187 = vadd.xlane.f32.xlu0 %v2156
    %v2188 = vpop.xlane.xlu0 %2187
    %v2189 = vmul.f32 %v2158, %v2108
    %v2190 = vmul.f32 %v2160, %v2108
    %v2191 = vmul.f32 %v2162, %v2108
    %v2192 = vmul.f32 %v2164, %v2108
    %v2193 = vmul.f32 %v2166, %v2108
    %v2194 = vmul.f32 %v2168, %v2108
    %v2195 = vmul.f32 %v2170, %v2108
    %v2196 = vmul.f32 %v2172, %v2108
    %v2197 = vmul.f32 %v2174, %v2108
    %v2198 = vmul.f32 %v2176, %v2108
    %v2199 = vmul.f32 %v2178, %v2108
    %v2200 = vmul.f32 %v2180, %v2108
    %v2201 = vmul.f32 %v2182, %v2108
    %v2202 = vmul.f32 %v2184, %v2108
    %v2203 = vmul.f32 %v2186, %v2108
    %v2204 = vmul.f32 %v2188, %v2108
    %v2205 = vadd.f32 %v2189, 1e-06
    %v2206 = vadd.f32 %v2190, 1e-06
    %v2207 = vadd.f32 %v2191, 1e-06
    %v2208 = vadd.f32 %v2192, 1e-06
    %v2209 = vadd.f32 %v2193, 1e-06
    %v2210 = vadd.f32 %v2194, 1e-06
    %v2211 = vadd.f32 %v2195, 1e-06
    %v2212 = vadd.f32 %v2196, 1e-06
    %v2213 = vadd.f32 %v2197, 1e-06
    %v2214 = vadd.f32 %v2198, 1e-06
    %v2215 = vadd.f32 %v2199, 1e-06
    %v2216 = vadd.f32 %v2200, 1e-06
    %v2217 = vadd.f32 %v2201, 1e-06
    %v2218 = vadd.f32 %v2202, 1e-06
    %v2219 = vadd.f32 %v2203, 1e-06
    %v2220 = vadd.f32 %v2204, 1e-06
    %v2221 = vrsqrt.pop %v2205
    %v2222 = vrsqrt.pop %v2206
    %v2223 = vrsqrt.pop %v2207
    %v2224 = vrsqrt.pop %v2208
    %v2225 = vrsqrt.pop %v2209
    %v2226 = vrsqrt.pop %v2210
    %v2227 = vrsqrt.pop %v2211
    %v2228 = vrsqrt.pop %v2212
    %v2229 = vrsqrt.pop %v2213
    %v2230 = vrsqrt.pop %v2214
    %v2231 = vrsqrt.pop %v2215
    %v2232 = vrsqrt.pop %v2216
    %v2233 = vrsqrt.pop %v2217
    %v2234 = vrsqrt.pop %v2218
    %v2235 = vrsqrt.pop %v2219
    %v2236 = vrsqrt.pop %v2220
    %v2237 = vmul.f32 %v2125, %v2221
    %v2238 = vmul.f32 %v2126, %v2222
    %v2239 = vmul.f32 %v2127, %v2223
    %v2240 = vmul.f32 %v2128, %v2224
    %v2241 = vmul.f32 %v2129, %v2225
    %v2242 = vmul.f32 %v2130, %v2226
    %v2243 = vmul.f32 %v2131, %v2227
    %v2244 = vmul.f32 %v2132, %v2228
    %v2245 = vmul.f32 %v2133, %v2229
    %v2246 = vmul.f32 %v2134, %v2230
    %v2247 = vmul.f32 %v2135, %v2231
    %v2248 = vmul.f32 %v2136, %v2232
    %v2249 = vmul.f32 %v2137, %v2233
    %v2250 = vmul.f32 %v2138, %v2234
    %v2251 = vmul.f32 %v2139, %v2235
    %v2252 = vmul.f32 %v2140, %v2236
    %v2253 = vld [vmem:[%s5] sm:$0x1]
    %v2255 = vlaneseq
    %v2256 = vshrl.u32 %v2255, 7
    %v2257 = vsub.s32 0, %v2256
    %v2258 = vrot.slane %v2253, %v2257
    %v2260 = vmul.f32 %v2237, %v2258
    %v2261 = vmul.f32 %v2238, %v2258
    %v2262 = vmul.f32 %v2239, %v2258
    %v2263 = vmul.f32 %v2240, %v2258
    %v2264 = vmul.f32 %v2241, %v2258
    %v2265 = vmul.f32 %v2242, %v2258
    %v2266 = vmul.f32 %v2243, %v2258
    %v2267 = vmul.f32 %v2244, %v2258
    %v2268 = vmul.f32 %v2245, %v2258
    %v2269 = vmul.f32 %v2246, %v2258
    %v2270 = vmul.f32 %v2247, %v2258
    %v2271 = vmul.f32 %v2248, %v2258
    %v2272 = vmul.f32 %v2249, %v2258
    %v2273 = vmul.f32 %v2250, %v2258
    %v2274 = vmul.f32 %v2251, %v2258
    %v2275 = vmul.f32 %v2252, %v2258
    %v2276 = vld [vmem:[%s6] sm:$0x1]
    %v2278 = vlaneseq
    %v2279 = vshrl.u32 %v2278, 7
    %v2280 = vsub.s32 0, %v2279
    %v2281 = vrot.slane %v2276, %v2280
    %v2283 = vadd.f32 %v2260, %v2281
    %v2284 = vadd.f32 %v2261, %v2281
    %v2285 = vadd.f32 %v2262, %v2281
    %v2286 = vadd.f32 %v2263, %v2281
    %v2287 = vadd.f32 %v2264, %v2281
    %v2288 = vadd.f32 %v2265, %v2281
    %v2289 = vadd.f32 %v2266, %v2281
    %v2290 = vadd.f32 %v2267, %v2281
    %v2291 = vadd.f32 %v2268, %v2281
    %v2292 = vadd.f32 %v2269, %v2281
    %v2293 = vadd.f32 %v2270, %v2281
    %v2294 = vadd.f32 %v2271, %v2281
    %v2295 = vadd.f32 %v2272, %v2281
    %v2296 = vadd.f32 %v2273, %v2281
    %v2297 = vadd.f32 %v2274, %v2281
    %v2298 = vadd.f32 %v2275, %v2281
    %v2299 = vpack.c.bf16 %v2284, %v2283
    %v2300 = vpack.c.bf16 %v2286, %v2285
    %v2301 = vpack.c.bf16 %v2288, %v2287
    %v2302 = vpack.c.bf16 %v2290, %v2289
    %v2303 = vpack.c.bf16 %v2292, %v2291
    %v2304 = vpack.c.bf16 %v2294, %v2293
    %v2305 = vpack.c.bf16 %v2296, %v2295
    %v2306 = vpack.c.bf16 %v2298, %v2297
    %v2307 = vld [vmem:[%s7] sm:$0xf]
    %v2308 = vld [vmem:[%s7 + $0x4] sm:$0xf]
    %v2309 = vld [vmem:[%s7 + $0x8] sm:$0xf]
    %v2310 = vld [vmem:[%s7 + $0xc] sm:$0xf]
    %v2311 = vld [vmem:[%s7 + $0x10] sm:$0xf]
    %v2312 = vld [vmem:[%s7 + $0x14] sm:$0xf]
    %v2313 = vld [vmem:[%s7 + $0x18] sm:$0xf]
    %v2314 = vld [vmem:[%s7 + $0x1c] sm:$0xf]
    %v2315 = vld [vmem:[%s7 + $0x20] sm:$0xf]
    %v2316 = vld [vmem:[%s7 + $0x24] sm:$0xf]
    %v2317 = vld [vmem:[%s7 + $0x28] sm:$0xf]
    %v2318 = vld [vmem:[%s7 + $0x2c] sm:$0xf]
    %v2319 = vld [vmem:[%s7 + $0x30] sm:$0xf]
    %v2320 = vld [vmem:[%s7 + $0x34] sm:$0xf]
    %v2321 = vld [vmem:[%s7 + $0x38] sm:$0xf]
    %v2322 = vld [vmem:[%s7 + $0x3c] sm:$0xf]
    %v2323 = vld [vmem:[%s8] sm:$0x1]
    %v2325 = vlaneseq
    %v2326 = vshrl.u32 %v2325, 7
    %v2327 = vsub.s32 0, %v2326
    %v2328 = vrot.slane %v2323, %v2327
    %v2346 = vunpack.c.l.b16 %v2307
    %v2347 = vunpack.c.l.b16 %v2308
    %v2348 = vunpack.c.l.b16 %v2309
    %v2349 = vunpack.c.l.b16 %v2310
    %v2350 = vunpack.c.l.b16 %v2311
    %v2351 = vunpack.c.l.b16 %v2312
    %v2352 = vunpack.c.l.b16 %v2313
    %v2353 = vunpack.c.l.b16 %v2314
    %v2354 = vunpack.c.l.b16 %v2315
    %v2355 = vunpack.c.l.b16 %v2316
    %v2356 = vunpack.c.l.b16 %v2317
    %v2357 = vunpack.c.l.b16 %v2318
    %v2358 = vunpack.c.l.b16 %v2319
    %v2359 = vunpack.c.l.b16 %v2320
    %v2360 = vunpack.c.l.b16 %v2321
    %v2361 = vunpack.c.l.b16 %v2322
    %v2362 = vpack.c.b16 %v2347, %v2346
    %v2363 = vpack.c.b16 %v2349, %v2348
    %v2364 = vpack.c.b16 %v2351, %v2350
    %v2365 = vpack.c.b16 %v2353, %v2352
    %v2366 = vpack.c.b16 %v2355, %v2354
    %v2367 = vpack.c.b16 %v2357, %v2356
    %v2368 = vpack.c.b16 %v2359, %v2358
    %v2369 = vpack.c.b16 %v2361, %v2360
    %2378 = vmatprep.subr.bf16.mxu0 0
    %2379 = vmatpush1.bf16.msra.mxu0 %v2369
    %2380 = vmatprep.subr.bf16.mxu0 0
    %2381 = vmatpush1.bf16.msra.mxu0 %v2368
    %2382 = vmatprep.subr.bf16.mxu0 0
    %2383 = vmatpush1.bf16.msra.mxu0 %v2367
    %2384 = vmatprep.subr.bf16.mxu0 0
    %2385 = vmatpush1.bf16.msra.mxu0 %v2366
    %2386 = vmatprep.subr.bf16.mxu0 0
    %2387 = vmatpush1.bf16.msra.mxu0 %v2365
    %2388 = vmatprep.subr.bf16.mxu0 0
    %2389 = vmatpush1.bf16.msra.mxu0 %v2364
    %2390 = vmatprep.subr.bf16.mxu0 0
    %2391 = vmatpush1.bf16.msra.mxu0 %v2363
    %2392 = vmatprep.subr.bf16.mxu0 0
    %2393 = vmatpush1.bf16.msra.mxu0 %v2362
    %2394 = vmatprep.subr.bf16.mxu0 0
    %2395 = vmatpush2.bf16.msra.mxu0 0
    %2396 = vmatprep.subr.bf16.mxu0 0
    %2397 = vmatpush2.bf16.msra.mxu0 0
    %2398 = vmatprep.subr.bf16.mxu0 0
    %2399 = vmatpush2.bf16.msra.mxu0 0
    %2400 = vmatprep.subr.bf16.mxu0 0
    %2401 = vmatpush2.bf16.msra.mxu0 0
    %2402 = vmatprep.subr.bf16.mxu0 0
    %2403 = vmatpush2.bf16.msra.mxu0 0
    %2404 = vmatprep.subr.bf16.mxu0 0
    %2405 = vmatpush2.bf16.msra.mxu0 0
    %2406 = vmatprep.subr.bf16.mxu0 0
    %2407 = vmatpush2.bf16.msra.mxu0 0
    %2408 = vmatprep.subr.bf16.mxu0 0
    %2409 = vmatpush2.bf16.msra.mxu0 0
    %2410 = vmatprep.mubr.bf16.mxu0 0
    %2411 = vmatmul.mubr.bf16.gmra.mxu0 %v2299
    %v2412 = vpop.f32.mrf.mxu0
    %v2413 = vadd.f32 %v2328, %v2412
    %v2414 = vpop.f32.mrf.mxu0
    %v2415 = vpop.f32.mrf.mxu0
    %v2416 = vadd.f32 %v2328, %v2415
    %v2417 = vpop.f32.mrf.mxu0
    %2418 = vmatprep.mubr.bf16.mxu0 0
    %2419 = vmatmul.mubr.bf16.gmra.mxu0 %v2300
    %v2420 = vpop.f32.mrf.mxu0
    %v2421 = vadd.f32 %v2328, %v2420
    %v2422 = vpop.f32.mrf.mxu0
    %v2423 = vpop.f32.mrf.mxu0
    %v2424 = vadd.f32 %v2328, %v2423
    %v2425 = vpop.f32.mrf.mxu0
    %2426 = vmatprep.mubr.bf16.mxu0 0
    %2427 = vmatmul.mubr.bf16.gmra.mxu0 %v2301
    %v2428 = vpop.f32.mrf.mxu0
    %v2429 = vadd.f32 %v2328, %v2428
    %v2430 = vpop.f32.mrf.mxu0
    %v2431 = vpop.f32.mrf.mxu0
    %v2432 = vadd.f32 %v2328, %v2431
    %v2433 = vpop.f32.mrf.mxu0
    %2434 = vmatprep.mubr.bf16.mxu0 0
    %2435 = vmatmul.mubr.bf16.gmra.mxu0 %v2302
    %v2436 = vpop.f32.mrf.mxu0
    %v2437 = vadd.f32 %v2328, %v2436
    %v2438 = vpop.f32.mrf.mxu0
    %v2439 = vpop.f32.mrf.mxu0
    %v2440 = vadd.f32 %v2328, %v2439
    %v2441 = vpop.f32.mrf.mxu0
    %2442 = vmatprep.mubr.bf16.mxu0 0
    %2443 = vmatmul.mubr.bf16.gmra.mxu0 %v2303
    %v2444 = vpop.f32.mrf.mxu0
    %v2445 = vadd.f32 %v2328, %v2444
    %v2446 = vpop.f32.mrf.mxu0
    %v2447 = vpop.f32.mrf.mxu0
    %v2448 = vadd.f32 %v2328, %v2447
    %v2449 = vpop.f32.mrf.mxu0
    %2450 = vmatprep.mubr.bf16.mxu0 0
    %2451 = vmatmul.mubr.bf16.gmra.mxu0 %v2304
    %v2452 = vpop.f32.mrf.mxu0
    %v2453 = vadd.f32 %v2328, %v2452
    %v2454 = vpop.f32.mrf.mxu0
    %v2455 = vpop.f32.mrf.mxu0
    %v2456 = vadd.f32 %v2328, %v2455
    %v2457 = vpop.f32.mrf.mxu0
    %2458 = vmatprep.mubr.bf16.mxu0 0
    %2459 = vmatmul.mubr.bf16.gmra.mxu0 %v2305
    %v2460 = vpop.f32.mrf.mxu0
    %v2461 = vadd.f32 %v2328, %v2460
    %v2462 = vpop.f32.mrf.mxu0
    %v2463 = vpop.f32.mrf.mxu0
    %v2464 = vadd.f32 %v2328, %v2463
    %v2465 = vpop.f32.mrf.mxu0
    %2466 = vmatprep.mubr.bf16.mxu0 0
    %2467 = vmatmul.mubr.bf16.gmra.mxu0 %v2306
    %v2468 = vpop.f32.mrf.mxu0
    %v2469 = vadd.f32 %v2328, %v2468
    %v2470 = vpop.f32.mrf.mxu0
    %v2471 = vpop.f32.mrf.mxu0
    %v2472 = vadd.f32 %v2328, %v2471
    %v2473 = vpop.f32.mrf.mxu0
    %2474 = vdwg.mxu0
    %v2475 = vmul.f32 %v2413, %v2413
    %v2476 = vmul.f32 %v2416, %v2416
    %v2477 = vmul.f32 %v2421, %v2421
    %v2478 = vmul.f32 %v2424, %v2424
    %v2479 = vmul.f32 %v2429, %v2429
    %v2480 = vmul.f32 %v2432, %v2432
    %v2481 = vmul.f32 %v2437, %v2437
    %v2482 = vmul.f32 %v2440, %v2440
    %v2483 = vmul.f32 %v2445, %v2445
    %v2484 = vmul.f32 %v2448, %v2448
    %v2485 = vmul.f32 %v2453, %v2453
    %v2486 = vmul.f32 %v2456, %v2456
    %v2487 = vmul.f32 %v2461, %v2461
    %v2488 = vmul.f32 %v2464, %v2464
    %v2489 = vmul.f32 %v2469, %v2469
    %v2490 = vmul.f32 %v2472, %v2472
    %v2491 = vmul.f32 %v2413, %v2475
    %v2492 = vmul.f32 %v2416, %v2476
    %v2493 = vmul.f32 %v2421, %v2477
    %v2494 = vmul.f32 %v2424, %v2478
    %v2495 = vmul.f32 %v2429, %v2479
    %v2496 = vmul.f32 %v2432, %v2480
    %v2497 = vmul.f32 %v2437, %v2481
    %v2498 = vmul.f32 %v2440, %v2482
    %v2499 = vmul.f32 %v2445, %v2483
    %v2500 = vmul.f32 %v2448, %v2484
    %v2501 = vmul.f32 %v2453, %v2485
    %v2502 = vmul.f32 %v2456, %v2486
    %v2503 = vmul.f32 %v2461, %v2487
    %v2504 = vmul.f32 %v2464, %v2488
    %v2505 = vmul.f32 %v2469, %v2489
    %v2506 = vmul.f32 %v2472, %v2490
    %v2507 = vmul.f32 %v2491, 0.044715
    %v2508 = vmul.f32 %v2492, 0.044715
    %v2509 = vmul.f32 %v2493, 0.044715
    %v2510 = vmul.f32 %v2494, 0.044715
    %v2511 = vmul.f32 %v2495, 0.044715
    %v2512 = vmul.f32 %v2496, 0.044715
    %v2513 = vmul.f32 %v2497, 0.044715
    %v2514 = vmul.f32 %v2498, 0.044715
    %v2515 = vmul.f32 %v2499, 0.044715
    %v2516 = vmul.f32 %v2500, 0.044715
    %v2517 = vmul.f32 %v2501, 0.044715
    %v2518 = vmul.f32 %v2502, 0.044715
    %v2519 = vmul.f32 %v2503, 0.044715
    %v2520 = vmul.f32 %v2504, 0.044715
    %v2521 = vmul.f32 %v2505, 0.044715
    %v2522 = vmul.f32 %v2506, 0.044715
    %v2523 = vadd.f32 %v2413, %v2507
    %v2524 = vadd.f32 %v2416, %v2508
    %v2525 = vadd.f32 %v2421, %v2509
    %v2526 = vadd.f32 %v2424, %v2510
    %v2527 = vadd.f32 %v2429, %v2511
    %v2528 = vadd.f32 %v2432, %v2512
    %v2529 = vadd.f32 %v2437, %v2513
    %v2530 = vadd.f32 %v2440, %v2514
    %v2531 = vadd.f32 %v2445, %v2515
    %v2532 = vadd.f32 %v2448, %v2516
    %v2533 = vadd.f32 %v2453, %v2517
    %v2534 = vadd.f32 %v2456, %v2518
    %v2535 = vadd.f32 %v2461, %v2519
    %v2536 = vadd.f32 %v2464, %v2520
    %v2537 = vadd.f32 %v2469, %v2521
    %v2538 = vadd.f32 %v2472, %v2522
    %v2539 = vmul.f32 %v2523, 0.7978846
    %v2540 = vmul.f32 %v2524, 0.7978846
    %v2541 = vmul.f32 %v2525, 0.7978846
    %v2542 = vmul.f32 %v2526, 0.7978846
    %v2543 = vmul.f32 %v2527, 0.7978846
    %v2544 = vmul.f32 %v2528, 0.7978846
    %v2545 = vmul.f32 %v2529, 0.7978846
    %v2546 = vmul.f32 %v2530, 0.7978846
    %v2547 = vmul.f32 %v2531, 0.7978846
    %v2548 = vmul.f32 %v2532, 0.7978846
    %v2549 = vmul.f32 %v2533, 0.7978846
    %v2550 = vmul.f32 %v2534, 0.7978846
    %v2551 = vmul.f32 %v2535, 0.7978846
    %v2552 = vmul.f32 %v2536, 0.7978846
    %v2553 = vmul.f32 %v2537, 0.7978846
    %v2554 = vmul.f32 %v2538, 0.7978846
    %v2555 = vtanh.pop %v2539
    %v2556 = vtanh.pop %v2540
    %v2557 = vtanh.pop %v2541
    %v2558 = vtanh.pop %v2542
    %v2559 = vtanh.pop %v2543
    %v2560 = vtanh.pop %v2544
    %v2561 = vtanh.pop %v2545
    %v2562 = vtanh.pop %v2546
    %v2563 = vtanh.pop %v2547
    %v2564 = vtanh.pop %v2548
    %v2565 = vtanh.pop %v2549
    %v2566 = vtanh.pop %v2550
    %v2567 = vtanh.pop %v2551
    %v2568 = vtanh.pop %v2552
    %v2569 = vtanh.pop %v2553
    %v2570 = vtanh.pop %v2554
    %v2571 = vadd.f32 %v2555, 1.0
    %v2572 = vadd.f32 %v2556, 1.0
    %v2573 = vadd.f32 %v2557, 1.0
    %v2574 = vadd.f32 %v2558, 1.0
    %v2575 = vadd.f32 %v2559, 1.0
    %v2576 = vadd.f32 %v2560, 1.0
    %v2577 = vadd.f32 %v2561, 1.0
    %v2578 = vadd.f32 %v2562, 1.0
    %v2579 = vadd.f32 %v2563, 1.0
    %v2580 = vadd.f32 %v2564, 1.0
    %v2581 = vadd.f32 %v2565, 1.0
    %v2582 = vadd.f32 %v2566, 1.0
    %v2583 = vadd.f32 %v2567, 1.0
    %v2584 = vadd.f32 %v2568, 1.0
    %v2585 = vadd.f32 %v2569, 1.0
    %v2586 = vadd.f32 %v2570, 1.0
    %v2587 = vmul.f32 %v2571, 0.5
    %v2588 = vmul.f32 %v2572, 0.5
    %v2589 = vmul.f32 %v2573, 0.5
    %v2590 = vmul.f32 %v2574, 0.5
    %v2591 = vmul.f32 %v2575, 0.5
    %v2592 = vmul.f32 %v2576, 0.5
    %v2593 = vmul.f32 %v2577, 0.5
    %v2594 = vmul.f32 %v2578, 0.5
    %v2595 = vmul.f32 %v2579, 0.5
    %v2596 = vmul.f32 %v2580, 0.5
    %v2597 = vmul.f32 %v2581, 0.5
    %v2598 = vmul.f32 %v2582, 0.5
    %v2599 = vmul.f32 %v2583, 0.5
    %v2600 = vmul.f32 %v2584, 0.5
    %v2601 = vmul.f32 %v2585, 0.5
    %v2602 = vmul.f32 %v2586, 0.5
    %v2603 = vmul.f32 %v2413, %v2587
    %v2604 = vmul.f32 %v2416, %v2588
    %v2605 = vmul.f32 %v2421, %v2589
    %v2606 = vmul.f32 %v2424, %v2590
    %v2607 = vmul.f32 %v2429, %v2591
    %v2608 = vmul.f32 %v2432, %v2592
    %v2609 = vmul.f32 %v2437, %v2593
    %v2610 = vmul.f32 %v2440, %v2594
    %v2611 = vmul.f32 %v2445, %v2595
    %v2612 = vmul.f32 %v2448, %v2596
    %v2613 = vmul.f32 %v2453, %v2597
    %v2614 = vmul.f32 %v2456, %v2598
    %v2615 = vmul.f32 %v2461, %v2599
    %v2616 = vmul.f32 %v2464, %v2600
    %v2617 = vmul.f32 %v2469, %v2601
    %v2618 = vmul.f32 %v2472, %v2602
    %v2619 = vld [vmem:[%s9] sm:$0xf]
    %v2620 = vpack.c.bf16 %v2604, %v2603
    %v2621 = vpack.c.bf16 %v2606, %v2605
    %v2622 = vpack.c.bf16 %v2608, %v2607
    %v2623 = vpack.c.bf16 %v2610, %v2609
    %v2624 = vpack.c.bf16 %v2612, %v2611
    %v2625 = vpack.c.bf16 %v2614, %v2613
    %v2626 = vpack.c.bf16 %v2616, %v2615
    %v2627 = vpack.c.bf16 %v2618, %v2617
    %2628 = vmatprep.subr.bf16.mxu0 0
    %2629 = vmatpush1.bf16.xpose.msra.mxu0 %v2627
    %2630 = vmatprep.subr.bf16.mxu0 0
    %2631 = vmatpush1.bf16.xpose.msra.mxu0 %v2626
    %2632 = vmatprep.subr.bf16.mxu0 0
    %2633 = vmatpush1.bf16.xpose.msra.mxu0 %v2625
    %2634 = vmatprep.subr.bf16.mxu0 0
    %2635 = vmatpush1.bf16.xpose.msra.mxu0 %v2624
    %2636 = vmatprep.subr.bf16.mxu0 0
    %2637 = vmatpush1.bf16.xpose.msra.mxu0 %v2623
    %2638 = vmatprep.subr.bf16.mxu0 0
    %2639 = vmatpush1.bf16.xpose.msra.mxu0 %v2622
    %2640 = vmatprep.subr.bf16.mxu0 0
    %2641 = vmatpush1.bf16.xpose.msra.mxu0 %v2621
    %2642 = vmatprep.subr.bf16.mxu0 0
    %2643 = vmatpush1.bf16.xpose.msra.mxu0 %v2620
    %2644 = vmatprep.subr.bf16.mxu0 0
    %2645 = vmatpush2.bf16.xpose.msra.mxu0 0
    %2646 = vmatprep.subr.bf16.mxu0 0
    %2647 = vmatpush2.bf16.xpose.msra.mxu0 0
    %2648 = vmatprep.subr.bf16.mxu0 0
    %2649 = vmatpush2.bf16.xpose.msra.mxu0 0
    %2650 = vmatprep.subr.bf16.mxu0 0
    %2651 = vmatpush2.bf16.xpose.msra.mxu0 0
    %2652 = vmatprep.subr.bf16.mxu0 0
    %2653 = vmatpush2.bf16.xpose.msra.mxu0 0
    %2654 = vmatprep.subr.bf16.mxu0 0
    %2655 = vmatpush2.bf16.xpose.msra.mxu0 0
    %2656 = vmatprep.subr.bf16.mxu0 0
    %2657 = vmatpush2.bf16.xpose.msra.mxu0 0
    %2658 = vmatprep.subr.bf16.mxu0 0
    %2659 = vmatpush2.bf16.xpose.msra.mxu0 0
    %2660 = vmatprep.mubr.bf16.mxu0 0
    %2661 = vmatmul.mubr.bf16.gmra.mxu0 %v2619
    %v2662 = vpop.f32.mrf.mxu0
    %v2663 = vadd.f32 0.0, %v2662
    %v2664 = vpop.f32.mrf.mxu0
    %v2665 = vpop.f32.mrf.mxu0
    %v2666 = vpop.f32.mrf.mxu0
    %2667 = vdwg.mxu0
    %2668 = vst [vmem:[%s10] sm:$0xff] %v2663
    // Predicated region
    $region50: #{actor_mask_sac_forward.1} parent=1 // pred_check
      _
    $region51: #{actor_mask_sac_forward.1} parent=1 // pred_check_branch
      %2670 = sbr.rel (0) target = $region53
    $region52: #{actor_mask_sac_forward.1} parent=1 // pred_region
      _
    $region53: #{actor_mask_sac_forward.1} parent=1 // pred_fallthru
      _
    // Predicated region
    $region54: #{actor_mask_sac_forward.1} parent=1 // pred_check
      _
    $region55: #{actor_mask_sac_forward.1} parent=1 // pred_check_branch
      %2672 = sbr.rel (0) target = $region57
    $region56: #{actor_mask_sac_forward.1} parent=1 // pred_region
      _
    $region57: #{actor_mask_sac_forward.1} parent=1 // pred_fallthru
      _
    %2673 = vsyncpa [#allocation3], 1
    %2674 = vsyncpa [#allocation5], 1

</llo_original>
